<compile_context>
chip_gen: v7x
topology: tpu7x:2x2x1
jax: 0.10.0
libtpu: 0.0.40
codegen_flags: <defaults>
</compile_context>

<pallas_src>
import jax
import jax.numpy as jnp
import numpy as np
from jax.experimental import pallas as pl
from jax.experimental.pallas import tpu as pltpu


# ----------------------------------------------------------------------------
# Fused kernel: 5 x (depthwise k=3 pad=1 + pointwise 1x1) + both MLP heads.
# One grid step = one chunk of whole batch elements, rows = chunk_batch * T.
# ----------------------------------------------------------------------------
def make_fused_kernel(T, num_blocks):
    def kernel(x_ref, *refs):
        out_ref = refs[-1]
        wrefs = refs[:-1]

        x = x_ref[...].astype(jnp.float32)                  # (rows, Cin0)
        rows = x.shape[0]

        # Edge masks for the zero-padded k=3 depthwise conv, hoisted once and
        # reused by all blocks (rows are whole batch elements of length T, so
        # t==0 / t==T-1 are exactly the positions where the roll wraps across
        # a batch boundary -> masking makes the wraparound harmless).
        t_idx = jax.lax.broadcasted_iota(jnp.int32, (rows, 1), 0) % T
        not_first = t_idx != 0
        not_last = t_idx != (T - 1)

        for b in range(num_blocks):
            dw = wrefs[2 * b][...].astype(jnp.float32)       # (4, Cin): 3 taps + bias row
            pw = wrefs[2 * b + 1][...].astype(jnp.float32)   # (Cin+1, H): weight + bias row
            cin = pw.shape[0] - 1

            x_prev = jnp.where(not_first, pltpu.roll(x, shift=1, axis=0), 0.0)
            x_next = jnp.where(not_last, pltpu.roll(x, shift=rows - 1, axis=0), 0.0)

            # depthwise conv: per-channel 3-tap filter + bias (VPU)
            d = x_prev * dw[0:1] + x * dw[1:2] + x_next * dw[2:3] + dw[3:4]

            # pointwise 1x1 conv == row matmul over channels (MXU)
            x = jnp.dot(d, pw[:cin],
                        preferred_element_type=jnp.float32) + pw[cin:cin + 1]

        # Fused heads: h = [relu(x@W1_ctc + b1_ctc) | relu(x@W1_ae + b1_ae)]
        # out = h @ blockdiag(W2_ctc, W2_ae) + [b2_ctc | b2_ae]   (lane-dense, padded)
        w1p = wrefs[-2][...].astype(jnp.float32)             # (H+1, 2H)
        w2p = wrefs[-1][...].astype(jnp.float32)             # (2H+1, OUT_PAD)
        H = w1p.shape[0] - 1

        h = jnp.maximum(
            jnp.dot(x, w1p[:H], preferred_element_type=jnp.float32) + w1p[H:H + 1],
            0.0)
        out = (jnp.dot(h, w2p[:2 * H], preferred_element_type=jnp.float32)
               + w2p[2 * H:2 * H + 1])
        out_ref[...] = out.astype(out_ref.dtype)

    return kernel


# ----------------------------------------------------------------------------
# Parameter init (same structure as before so the pure-JAX reference matches).
# ----------------------------------------------------------------------------
def init_params(key, input_dim, hidden_dim, num_classes, num_blocks=5):
    params = {"blocks": []}
    k = key

    def nxt():
        nonlocal k
        k, sub = jax.random.split(k)
        return sub

    for i in range(num_blocks):
        cin = input_dim if i == 0 else hidden_dim
        cout = hidden_dim
        params["blocks"].append(dict(
            dw_w=jax.random.normal(nxt(), (3, cin), jnp.float32) * 0.1,     # depthwise (k, Cin)
            dw_b=jax.random.normal(nxt(), (1, cin), jnp.float32) * 0.1,
            pw_w=jax.random.normal(nxt(), (cin, cout), jnp.float32) * 0.1,  # pointwise (Cin, Cout)
            pw_b=jax.random.normal(nxt(), (1, cout), jnp.float32) * 0.1,
        ))
    params["ctc"] = dict(
        w1=jax.random.normal(nxt(), (hidden_dim, hidden_dim), jnp.float32) * 0.1,
        b1=jax.random.normal(nxt(), (1, hidden_dim), jnp.float32) * 0.1,
        w2=jax.random.normal(nxt(), (hidden_dim, num_classes), jnp.float32) * 0.1,
        b2=jax.random.normal(nxt(), (1, num_classes), jnp.float32) * 0.1,
    )
    params["ae"] = dict(
        w1=jax.random.normal(nxt(), (hidden_dim, hidden_dim), jnp.float32) * 0.1,
        b1=jax.random.normal(nxt(), (1, hidden_dim), jnp.float32) * 0.1,
        w2=jax.random.normal(nxt(), (hidden_dim, hidden_dim), jnp.float32) * 0.1,
        b2=jax.random.normal(nxt(), (1, hidden_dim), jnp.float32) * 0.1,
    )
    return params


# ----------------------------------------------------------------------------
# Forward pass: one fused pallas_call for the whole network.
# ----------------------------------------------------------------------------
@jax.jit
def acoustic_encoder_forward(audio_features, params):
    """audio_features: (B, Input_Dim, T) like PyTorch.
    Returns (ctc_logits (B,T,num_classes), frame_embeddings (B,T,hidden))."""
    B, Cin0, T = audio_features.shape
    H = params["blocks"][0]["pw_w"].shape[1]
    NC = params["ctc"]["w2"].shape[1]
    num_blocks = len(params["blocks"])
    OUT = NC + H
    OUT_PAD = ((OUT + 127) // 128) * 128          # lane-dense combined head output

    # (B, C, T) -> (B*T, C): channels on lanes, batch*time rows feed the MXU M-dim.
    x = jnp.transpose(audio_features, (0, 2, 1)).reshape(B * T, Cin0)

    # Pack per-block weights: dw_pack = [3 taps; bias] (4, Cin); pw_pack = [W; bias] (Cin+1, H).
    weight_args = []
    for blk in params["blocks"]:
        weight_args.append(jnp.concatenate([blk["dw_w"], blk["dw_b"]], axis=0))
        weight_args.append(jnp.concatenate([blk["pw_w"], blk["pw_b"]], axis=0))

    # Fuse both heads: side-by-side first layer, block-diagonal + lane-padded second layer.
    c, a = params["ctc"], params["ae"]
    w1_pack = jnp.concatenate([
        jnp.concatenate([c["w1"], a["w1"]], axis=1),      # (H, 2H)
        jnp.concatenate([c["b1"], a["b1"]], axis=1),      # (1, 2H)
    ], axis=0)                                            # (H+1, 2H)
    w2_bd = jnp.zeros((2 * H, OUT_PAD), jnp.float32)
    w2_bd = w2_bd.at[:H, :NC].set(c["w2"])
    w2_bd = w2_bd.at[H:, NC:NC + H].set(a["w2"])
    b2_row = jnp.zeros((1, OUT_PAD), jnp.float32)
    b2_row = b2_row.at[:, :NC].set(c["b2"])
    b2_row = b2_row.at[:, NC:NC + H].set(a["b2"])
    w2_pack = jnp.concatenate([w2_bd, b2_row], axis=0)    # (2H+1, OUT_PAD)
    weight_args += [w1_pack, w2_pack]

    # Batch-chunk grid: whole batch elements per step (no halo needed across steps).
    # TODO(synk): for very long production T (v7x 64 MiB VMEM), additionally tile T
    # with a num_blocks-frame halo; not needed at these shapes.
    rows_target = 512
    bb = min(B, max(1, rows_target // T))
    while B % bb != 0:
        bb -= 1
    if bb < B and (bb * T) % 8 != 0:
        bb = B                                            # keep (8,·) sublane alignment
    n_chunks = B // bb
    rows = bb * T

    in_specs = [pl.BlockSpec((rows, Cin0), lambda i: (i, 0))]
    for w in weight_args:
        in_specs.append(pl.BlockSpec(w.shape, lambda i: (0, 0)))  # resident weights

    out = pl.pallas_call(
        make_fused_kernel(T, num_blocks),
        out_shape=jax.ShapeDtypeStruct((B * T, OUT_PAD), audio_features.dtype),
        grid_spec=pltpu.PrefetchScalarGridSpec(
            num_scalar_prefetch=0,
            grid=(n_chunks,),
            in_specs=in_specs,
            out_specs=pl.BlockSpec((rows, OUT_PAD), lambda i: (i, 0)),
        ),
        compiler_params=pltpu.CompilerParams(
            dimension_semantics=("parallel",)),
    )(x, *weight_args)

    ctc_logits = out[:, :NC].reshape(B, T, NC)
    frame_embeddings = out[:, NC:NC + H].reshape(B, T, H)
    return ctc_logits, frame_embeddings


# ----------------------------------------------------------------------------
# Pure-JAX reference (correctness check).
# ----------------------------------------------------------------------------
def ref_forward(audio_features, params):
    x = jnp.transpose(audio_features, (0, 2, 1))           # (B, T, C)
    for blk in params["blocks"]:
        xp = jnp.pad(x, ((0, 0), (1, 1), (0, 0)))
        dw = (xp[:, :-2, :] * blk["dw_w"][0]
              + xp[:, 1:-1, :] * blk["dw_w"][1]
              + xp[:, 2:, :] * blk["dw_w"][2]) + blk["dw_b"][0]
        x = jnp.einsum("btc,cd->btd", dw, blk["pw_w"]) + blk["pw_b"][0]

    def head(x, p):
        h = jnp.maximum(jnp.einsum("bth,hk->btk", x, p["w1"]) + p["b1"][0], 0.0)
        return jnp.einsum("bth,hk->btk", h, p["w2"]) + p["b2"][0]

    return head(x, params["ctc"]), head(x, params["ae"])


if __name__ == "__main__":
    B, INPUT_DIM, HIDDEN_DIM, NUM_CLASSES, T = 2, 16, 32, 8, 16

    key = jax.random.PRNGKey(0)
    key, pkey, xkey = jax.random.split(key, 3)
    params = init_params(pkey, INPUT_DIM, HIDDEN_DIM, NUM_CLASSES, num_blocks=5)
    audio_features = jax.random.normal(xkey, (B, INPUT_DIM, T), jnp.float32)

    ctc_logits, frame_embeddings = acoustic_encoder_forward(audio_features, params)
    jax.block_until_ready((ctc_logits, frame_embeddings))

    ref_ctc, ref_ae = ref_forward(audio_features, params)
    assert ctc_logits.shape == (B, T, NUM_CLASSES)
    assert frame_embeddings.shape == (B, T, HIDDEN_DIM)
    np.testing.assert_allclose(np.asarray(ctc_logits), np.asarray(ref_ctc),
                               rtol=1e-4, atol=1e-4)
    np.testing.assert_allclose(np.asarray(frame_embeddings), np.asarray(ref_ae),
                               rtol=1e-4, atol=1e-4)
    print("KERNEL_OK")
</pallas_src>

<mosaic_0001>
module attributes {stable_mosaic.version = 11 : i64} {
  func.func @kernel(%arg0: i32, %arg1: memref<32x16xf32, #tpu.memory_space<vmem>>, %arg2: memref<4x16xf32, #tpu.memory_space<vmem>>, %arg3: memref<17x32xf32, #tpu.memory_space<vmem>>, %arg4: memref<4x32xf32, #tpu.memory_space<vmem>>, %arg5: memref<33x32xf32, #tpu.memory_space<vmem>>, %arg6: memref<4x32xf32, #tpu.memory_space<vmem>>, %arg7: memref<33x32xf32, #tpu.memory_space<vmem>>, %arg8: memref<4x32xf32, #tpu.memory_space<vmem>>, %arg9: memref<33x32xf32, #tpu.memory_space<vmem>>, %arg10: memref<4x32xf32, #tpu.memory_space<vmem>>, %arg11: memref<33x32xf32, #tpu.memory_space<vmem>>, %arg12: memref<33x64xf32, #tpu.memory_space<vmem>>, %arg13: memref<65x128xf32, #tpu.memory_space<vmem>>, %arg14: memref<32x128xf32, #tpu.memory_space<vmem>>) attributes {dimension_semantics = [#tpu.dimension_semantics<parallel>], iteration_bounds = array<i64: 1>, scalar_prefetch = 0 : i64, scratch_operands = 0 : i64, tpu.core_type = #tpu.core_type<tc>, window_params = [{transform_indices = @transform_0, window_bounds = array<i64: 32, 16>}, {pipeline_mode = #tpu.pipeline_mode<synchronous>, transform_indices = @transform_1, window_bounds = array<i64: 4, 16>}, {pipeline_mode = #tpu.pipeline_mode<synchronous>, transform_indices = @transform_2, window_bounds = array<i64: 17, 32>}, {pipeline_mode = #tpu.pipeline_mode<synchronous>, transform_indices = @transform_3, window_bounds = array<i64: 4, 32>}, {pipeline_mode = #tpu.pipeline_mode<synchronous>, transform_indices = @transform_4, window_bounds = array<i64: 33, 32>}, {pipeline_mode = #tpu.pipeline_mode<synchronous>, transform_indices = @transform_5, window_bounds = array<i64: 4, 32>}, {pipeline_mode = #tpu.pipeline_mode<synchronous>, transform_indices = @transform_6, window_bounds = array<i64: 33, 32>}, {pipeline_mode = #tpu.pipeline_mode<synchronous>, transform_indices = @transform_7, window_bounds = array<i64: 4, 32>}, {pipeline_mode = #tpu.pipeline_mode<synchronous>, transform_indices = @transform_8, window_bounds = array<i64: 33, 32>}, {pipeline_mode = #tpu.pipeline_mode<synchronous>, transform_indices = @transform_9, window_bounds = array<i64: 4, 32>}, {pipeline_mode = #tpu.pipeline_mode<synchronous>, transform_indices = @transform_10, window_bounds = array<i64: 33, 32>}, {pipeline_mode = #tpu.pipeline_mode<synchronous>, transform_indices = @transform_11, window_bounds = array<i64: 33, 64>}, {pipeline_mode = #tpu.pipeline_mode<synchronous>, transform_indices = @transform_12, window_bounds = array<i64: 65, 128>}, {transform_indices = @transform_13, window_bounds = array<i64: 32, 128>}]} {
    %c0 = arith.constant 0 : index
    %c0_0 = arith.constant 0 : index
    %0 = vector.load %arg1[%c0, %c0_0] : memref<32x16xf32, #tpu.memory_space<vmem>>, vector<32x16xf32>
    %1 = tpu.iota {dimensions = array<i32: 0>} : vector<32x1xi32>
    %c16_i32 = arith.constant 16 : i32
    %c0_i32 = arith.constant 0 : i32
    %2 = arith.cmpi eq, %c16_i32, %c0_i32 : i32
    %c1_i32 = arith.constant 1 : i32
    %3 = arith.select %2, %c1_i32, %c16_i32 : i32
    %4 = vector.broadcast %3 : i32 to vector<32x1xi32>
    %5 = arith.remsi %1, %4 : vector<32x1xi32>
    %c0_i32_1 = arith.constant 0 : i32
    %6 = vector.broadcast %c0_i32_1 : i32 to vector<32x1xi32>
    %7 = arith.cmpi ne, %5, %6 : vector<32x1xi32>
    %c0_i32_2 = arith.constant 0 : i32
    %8 = vector.broadcast %c0_i32_2 : i32 to vector<32x1xi32>
    %9 = arith.cmpi slt, %5, %8 : vector<32x1xi32>
    %c0_i32_3 = arith.constant 0 : i32
    %10 = arith.cmpi slt, %3, %c0_i32_3 : i32
    %11 = vector.broadcast %10 : i1 to vector<32x1xi1>
    %12 = vector.broadcast %11 : vector<32x1xi1> to vector<32x1xi1>
    %13 = arith.xori %9, %12 : vector<32x1xi1>
    %14 = arith.andi %13, %7 : vector<32x1xi1>
    %15 = vector.broadcast %3 : i32 to vector<32x1xi32>
    %16 = arith.addi %5, %15 : vector<32x1xi32>
    %17 = arith.select %14, %16, %5 : vector<32x1xi1>, vector<32x1xi32>
    %c0_i32_4 = arith.constant 0 : i32
    %18 = vector.broadcast %c0_i32_4 : i32 to vector<32x1xi32>
    %19 = arith.cmpi ne, %17, %18 : vector<32x1xi32>
    %c15_i32 = arith.constant 15 : i32
    %20 = vector.broadcast %c15_i32 : i32 to vector<32x1xi32>
    %21 = arith.cmpi ne, %17, %20 : vector<32x1xi32>
    %c0_5 = arith.constant 0 : index
    %c0_6 = arith.constant 0 : index
    %22 = vector.load %arg2[%c0_5, %c0_6] : memref<4x16xf32, #tpu.memory_space<vmem>>, vector<4x16xf32>
    %c0_7 = arith.constant 0 : index
    %c0_8 = arith.constant 0 : index
    %23 = vector.load %arg3[%c0_7, %c0_8] : memref<17x32xf32, #tpu.memory_space<vmem>>, vector<17x32xf32>
    %c1_i32_9 = arith.constant 1 : i32
    %24 = tpu.dynamic_rotate %0 by %c1_i32_9 dim 0 : vector<32x16xf32>, i32 -> vector<32x16xf32>
    %cst = arith.constant 0.000000e+00 : f32
    %25 = vector.shape_cast %19 : vector<32x1xi1> to vector<32x1xi1>
    %26 = vector.broadcast %25 : vector<32x1xi1> to vector<32x16xi1>
    %27 = vector.broadcast %cst : f32 to vector<32x16xf32>
    %28 = arith.select %26, %24, %27 : vector<32x16xi1>, vector<32x16xf32>
    %c31_i32 = arith.constant 31 : i32
    %29 = tpu.dynamic_rotate %0 by %c31_i32 dim 0 : vector<32x16xf32>, i32 -> vector<32x16xf32>
    %cst_10 = arith.constant 0.000000e+00 : f32
    %30 = vector.shape_cast %21 : vector<32x1xi1> to vector<32x1xi1>
    %31 = vector.broadcast %30 : vector<32x1xi1> to vector<32x16xi1>
    %32 = vector.broadcast %cst_10 : f32 to vector<32x16xf32>
    %33 = arith.select %31, %29, %32 : vector<32x16xi1>, vector<32x16xf32>
    %34 = vector.extract_strided_slice %22 {offsets = [0, 0], sizes = [1, 16], strides = [1, 1]} : vector<4x16xf32> to vector<1x16xf32>
    %35 = vector.broadcast %34 : vector<1x16xf32> to vector<32x16xf32>
    %36 = arith.mulf %28, %35 : vector<32x16xf32>
    %37 = vector.extract_strided_slice %22 {offsets = [1, 0], sizes = [1, 16], strides = [1, 1]} : vector<4x16xf32> to vector<1x16xf32>
    %38 = vector.broadcast %37 : vector<1x16xf32> to vector<32x16xf32>
    %39 = arith.mulf %0, %38 : vector<32x16xf32>
    %40 = arith.addf %36, %39 : vector<32x16xf32>
    %41 = vector.extract_strided_slice %22 {offsets = [2, 0], sizes = [1, 16], strides = [1, 1]} : vector<4x16xf32> to vector<1x16xf32>
    %42 = vector.broadcast %41 : vector<1x16xf32> to vector<32x16xf32>
    %43 = arith.mulf %33, %42 : vector<32x16xf32>
    %44 = arith.addf %40, %43 : vector<32x16xf32>
    %45 = vector.extract_strided_slice %22 {offsets = [3, 0], sizes = [1, 16], strides = [1, 1]} : vector<4x16xf32> to vector<1x16xf32>
    %46 = vector.broadcast %45 : vector<1x16xf32> to vector<32x16xf32>
    %47 = arith.addf %44, %46 : vector<32x16xf32>
    %48 = vector.extract_strided_slice %23 {offsets = [0, 0], sizes = [16, 32], strides = [1, 1]} : vector<17x32xf32> to vector<16x32xf32>
    %cst_11 = arith.constant dense<0.000000e+00> : vector<32x32xf32>
    %49 = tpu.matmul %47, %48, %cst_11 {dimension_numbers = #tpu.dot_dimension_numbers<[1], [0], [0], [1], [0, 0, 1, 1], [], []>} : vector<32x16xf32>, vector<16x32xf32>, vector<32x32xf32> -> vector<32x32xf32>
    %50 = vector.extract_strided_slice %23 {offsets = [16, 0], sizes = [1, 32], strides = [1, 1]} : vector<17x32xf32> to vector<1x32xf32>
    %51 = vector.broadcast %50 : vector<1x32xf32> to vector<32x32xf32>
    %52 = arith.addf %49, %51 : vector<32x32xf32>
    %c0_12 = arith.constant 0 : index
    %c0_13 = arith.constant 0 : index
    %53 = vector.load %arg4[%c0_12, %c0_13] : memref<4x32xf32, #tpu.memory_space<vmem>>, vector<4x32xf32>
    %c0_14 = arith.constant 0 : index
    %c0_15 = arith.constant 0 : index
    %54 = vector.load %arg5[%c0_14, %c0_15] : memref<33x32xf32, #tpu.memory_space<vmem>>, vector<33x32xf32>
    %c1_i32_16 = arith.constant 1 : i32
    %55 = tpu.dynamic_rotate %52 by %c1_i32_16 dim 0 : vector<32x32xf32>, i32 -> vector<32x32xf32>
    %cst_17 = arith.constant 0.000000e+00 : f32
    %56 = vector.shape_cast %19 : vector<32x1xi1> to vector<32x1xi1>
    %57 = vector.broadcast %56 : vector<32x1xi1> to vector<32x32xi1>
    %58 = vector.broadcast %cst_17 : f32 to vector<32x32xf32>
    %59 = arith.select %57, %55, %58 : vector<32x32xi1>, vector<32x32xf32>
    %c31_i32_18 = arith.constant 31 : i32
    %60 = tpu.dynamic_rotate %52 by %c31_i32_18 dim 0 : vector<32x32xf32>, i32 -> vector<32x32xf32>
    %cst_19 = arith.constant 0.000000e+00 : f32
    %61 = vector.shape_cast %21 : vector<32x1xi1> to vector<32x1xi1>
    %62 = vector.broadcast %61 : vector<32x1xi1> to vector<32x32xi1>
    %63 = vector.broadcast %cst_19 : f32 to vector<32x32xf32>
    %64 = arith.select %62, %60, %63 : vector<32x32xi1>, vector<32x32xf32>
    %65 = vector.extract_strided_slice %53 {offsets = [0, 0], sizes = [1, 32], strides = [1, 1]} : vector<4x32xf32> to vector<1x32xf32>
    %66 = vector.broadcast %65 : vector<1x32xf32> to vector<32x32xf32>
    %67 = arith.mulf %59, %66 : vector<32x32xf32>
    %68 = vector.extract_strided_slice %53 {offsets = [1, 0], sizes = [1, 32], strides = [1, 1]} : vector<4x32xf32> to vector<1x32xf32>
    %69 = vector.broadcast %68 : vector<1x32xf32> to vector<32x32xf32>
    %70 = arith.mulf %52, %69 : vector<32x32xf32>
    %71 = arith.addf %67, %70 : vector<32x32xf32>
    %72 = vector.extract_strided_slice %53 {offsets = [2, 0], sizes = [1, 32], strides = [1, 1]} : vector<4x32xf32> to vector<1x32xf32>
    %73 = vector.broadcast %72 : vector<1x32xf32> to vector<32x32xf32>
    %74 = arith.mulf %64, %73 : vector<32x32xf32>
    %75 = arith.addf %71, %74 : vector<32x32xf32>
    %76 = vector.extract_strided_slice %53 {offsets = [3, 0], sizes = [1, 32], strides = [1, 1]} : vector<4x32xf32> to vector<1x32xf32>
    %77 = vector.broadcast %76 : vector<1x32xf32> to vector<32x32xf32>
    %78 = arith.addf %75, %77 : vector<32x32xf32>
    %79 = vector.extract_strided_slice %54 {offsets = [0, 0], sizes = [32, 32], strides = [1, 1]} : vector<33x32xf32> to vector<32x32xf32>
    %cst_20 = arith.constant dense<0.000000e+00> : vector<32x32xf32>
    %80 = tpu.matmul %78, %79, %cst_20 {dimension_numbers = #tpu.dot_dimension_numbers<[1], [0], [0], [1], [0, 0, 1, 1], [], []>} : vector<32x32xf32>, vector<32x32xf32>, vector<32x32xf32> -> vector<32x32xf32>
    %81 = vector.extract_strided_slice %54 {offsets = [32, 0], sizes = [1, 32], strides = [1, 1]} : vector<33x32xf32> to vector<1x32xf32>
    %82 = vector.broadcast %81 : vector<1x32xf32> to vector<32x32xf32>
    %83 = arith.addf %80, %82 : vector<32x32xf32>
    %c0_21 = arith.constant 0 : index
    %c0_22 = arith.constant 0 : index
    %84 = vector.load %arg6[%c0_21, %c0_22] : memref<4x32xf32, #tpu.memory_space<vmem>>, vector<4x32xf32>
    %c0_23 = arith.constant 0 : index
    %c0_24 = arith.constant 0 : index
    %85 = vector.load %arg7[%c0_23, %c0_24] : memref<33x32xf32, #tpu.memory_space<vmem>>, vector<33x32xf32>
    %c1_i32_25 = arith.constant 1 : i32
    %86 = tpu.dynamic_rotate %83 by %c1_i32_25 dim 0 : vector<32x32xf32>, i32 -> vector<32x32xf32>
    %cst_26 = arith.constant 0.000000e+00 : f32
    %87 = vector.shape_cast %19 : vector<32x1xi1> to vector<32x1xi1>
    %88 = vector.broadcast %87 : vector<32x1xi1> to vector<32x32xi1>
    %89 = vector.broadcast %cst_26 : f32 to vector<32x32xf32>
    %90 = arith.select %88, %86, %89 : vector<32x32xi1>, vector<32x32xf32>
    %c31_i32_27 = arith.constant 31 : i32
    %91 = tpu.dynamic_rotate %83 by %c31_i32_27 dim 0 : vector<32x32xf32>, i32 -> vector<32x32xf32>
    %cst_28 = arith.constant 0.000000e+00 : f32
    %92 = vector.shape_cast %21 : vector<32x1xi1> to vector<32x1xi1>
    %93 = vector.broadcast %92 : vector<32x1xi1> to vector<32x32xi1>
    %94 = vector.broadcast %cst_28 : f32 to vector<32x32xf32>
    %95 = arith.select %93, %91, %94 : vector<32x32xi1>, vector<32x32xf32>
    %96 = vector.extract_strided_slice %84 {offsets = [0, 0], sizes = [1, 32], strides = [1, 1]} : vector<4x32xf32> to vector<1x32xf32>
    %97 = vector.broadcast %96 : vector<1x32xf32> to vector<32x32xf32>
    %98 = arith.mulf %90, %97 : vector<32x32xf32>
    %99 = vector.extract_strided_slice %84 {offsets = [1, 0], sizes = [1, 32], strides = [1, 1]} : vector<4x32xf32> to vector<1x32xf32>
    %100 = vector.broadcast %99 : vector<1x32xf32> to vector<32x32xf32>
    %101 = arith.mulf %83, %100 : vector<32x32xf32>
    %102 = arith.addf %98, %101 : vector<32x32xf32>
    %103 = vector.extract_strided_slice %84 {offsets = [2, 0], sizes = [1, 32], strides = [1, 1]} : vector<4x32xf32> to vector<1x32xf32>
    %104 = vector.broadcast %103 : vector<1x32xf32> to vector<32x32xf32>
    %105 = arith.mulf %95, %104 : vector<32x32xf32>
    %106 = arith.addf %102, %105 : vector<32x32xf32>
    %107 = vector.extract_strided_slice %84 {offsets = [3, 0], sizes = [1, 32], strides = [1, 1]} : vector<4x32xf32> to vector<1x32xf32>
    %108 = vector.broadcast %107 : vector<1x32xf32> to vector<32x32xf32>
    %109 = arith.addf %106, %108 : vector<32x32xf32>
    %110 = vector.extract_strided_slice %85 {offsets = [0, 0], sizes = [32, 32], strides = [1, 1]} : vector<33x32xf32> to vector<32x32xf32>
    %cst_29 = arith.constant dense<0.000000e+00> : vector<32x32xf32>
    %111 = tpu.matmul %109, %110, %cst_29 {dimension_numbers = #tpu.dot_dimension_numbers<[1], [0], [0], [1], [0, 0, 1, 1], [], []>} : vector<32x32xf32>, vector<32x32xf32>, vector<32x32xf32> -> vector<32x32xf32>
    %112 = vector.extract_strided_slice %85 {offsets = [32, 0], sizes = [1, 32], strides = [1, 1]} : vector<33x32xf32> to vector<1x32xf32>
    %113 = vector.broadcast %112 : vector<1x32xf32> to vector<32x32xf32>
    %114 = arith.addf %111, %113 : vector<32x32xf32>
    %c0_30 = arith.constant 0 : index
    %c0_31 = arith.constant 0 : index
    %115 = vector.load %arg8[%c0_30, %c0_31] : memref<4x32xf32, #tpu.memory_space<vmem>>, vector<4x32xf32>
    %c0_32 = arith.constant 0 : index
    %c0_33 = arith.constant 0 : index
    %116 = vector.load %arg9[%c0_32, %c0_33] : memref<33x32xf32, #tpu.memory_space<vmem>>, vector<33x32xf32>
    %c1_i32_34 = arith.constant 1 : i32
    %117 = tpu.dynamic_rotate %114 by %c1_i32_34 dim 0 : vector<32x32xf32>, i32 -> vector<32x32xf32>
    %cst_35 = arith.constant 0.000000e+00 : f32
    %118 = vector.shape_cast %19 : vector<32x1xi1> to vector<32x1xi1>
    %119 = vector.broadcast %118 : vector<32x1xi1> to vector<32x32xi1>
    %120 = vector.broadcast %cst_35 : f32 to vector<32x32xf32>
    %121 = arith.select %119, %117, %120 : vector<32x32xi1>, vector<32x32xf32>
    %c31_i32_36 = arith.constant 31 : i32
    %122 = tpu.dynamic_rotate %114 by %c31_i32_36 dim 0 : vector<32x32xf32>, i32 -> vector<32x32xf32>
    %cst_37 = arith.constant 0.000000e+00 : f32
    %123 = vector.shape_cast %21 : vector<32x1xi1> to vector<32x1xi1>
    %124 = vector.broadcast %123 : vector<32x1xi1> to vector<32x32xi1>
    %125 = vector.broadcast %cst_37 : f32 to vector<32x32xf32>
    %126 = arith.select %124, %122, %125 : vector<32x32xi1>, vector<32x32xf32>
    %127 = vector.extract_strided_slice %115 {offsets = [0, 0], sizes = [1, 32], strides = [1, 1]} : vector<4x32xf32> to vector<1x32xf32>
    %128 = vector.broadcast %127 : vector<1x32xf32> to vector<32x32xf32>
    %129 = arith.mulf %121, %128 : vector<32x32xf32>
    %130 = vector.extract_strided_slice %115 {offsets = [1, 0], sizes = [1, 32], strides = [1, 1]} : vector<4x32xf32> to vector<1x32xf32>
    %131 = vector.broadcast %130 : vector<1x32xf32> to vector<32x32xf32>
    %132 = arith.mulf %114, %131 : vector<32x32xf32>
    %133 = arith.addf %129, %132 : vector<32x32xf32>
    %134 = vector.extract_strided_slice %115 {offsets = [2, 0], sizes = [1, 32], strides = [1, 1]} : vector<4x32xf32> to vector<1x32xf32>
    %135 = vector.broadcast %134 : vector<1x32xf32> to vector<32x32xf32>
    %136 = arith.mulf %126, %135 : vector<32x32xf32>
    %137 = arith.addf %133, %136 : vector<32x32xf32>
    %138 = vector.extract_strided_slice %115 {offsets = [3, 0], sizes = [1, 32], strides = [1, 1]} : vector<4x32xf32> to vector<1x32xf32>
    %139 = vector.broadcast %138 : vector<1x32xf32> to vector<32x32xf32>
    %140 = arith.addf %137, %139 : vector<32x32xf32>
    %141 = vector.extract_strided_slice %116 {offsets = [0, 0], sizes = [32, 32], strides = [1, 1]} : vector<33x32xf32> to vector<32x32xf32>
    %cst_38 = arith.constant dense<0.000000e+00> : vector<32x32xf32>
    %142 = tpu.matmul %140, %141, %cst_38 {dimension_numbers = #tpu.dot_dimension_numbers<[1], [0], [0], [1], [0, 0, 1, 1], [], []>} : vector<32x32xf32>, vector<32x32xf32>, vector<32x32xf32> -> vector<32x32xf32>
    %143 = vector.extract_strided_slice %116 {offsets = [32, 0], sizes = [1, 32], strides = [1, 1]} : vector<33x32xf32> to vector<1x32xf32>
    %144 = vector.broadcast %143 : vector<1x32xf32> to vector<32x32xf32>
    %145 = arith.addf %142, %144 : vector<32x32xf32>
    %c0_39 = arith.constant 0 : index
    %c0_40 = arith.constant 0 : index
    %146 = vector.load %arg10[%c0_39, %c0_40] : memref<4x32xf32, #tpu.memory_space<vmem>>, vector<4x32xf32>
    %c0_41 = arith.constant 0 : index
    %c0_42 = arith.constant 0 : index
    %147 = vector.load %arg11[%c0_41, %c0_42] : memref<33x32xf32, #tpu.memory_space<vmem>>, vector<33x32xf32>
    %c1_i32_43 = arith.constant 1 : i32
    %148 = tpu.dynamic_rotate %145 by %c1_i32_43 dim 0 : vector<32x32xf32>, i32 -> vector<32x32xf32>
    %cst_44 = arith.constant 0.000000e+00 : f32
    %149 = vector.shape_cast %19 : vector<32x1xi1> to vector<32x1xi1>
    %150 = vector.broadcast %149 : vector<32x1xi1> to vector<32x32xi1>
    %151 = vector.broadcast %cst_44 : f32 to vector<32x32xf32>
    %152 = arith.select %150, %148, %151 : vector<32x32xi1>, vector<32x32xf32>
    %c31_i32_45 = arith.constant 31 : i32
    %153 = tpu.dynamic_rotate %145 by %c31_i32_45 dim 0 : vector<32x32xf32>, i32 -> vector<32x32xf32>
    %cst_46 = arith.constant 0.000000e+00 : f32
    %154 = vector.shape_cast %21 : vector<32x1xi1> to vector<32x1xi1>
    %155 = vector.broadcast %154 : vector<32x1xi1> to vector<32x32xi1>
    %156 = vector.broadcast %cst_46 : f32 to vector<32x32xf32>
    %157 = arith.select %155, %153, %156 : vector<32x32xi1>, vector<32x32xf32>
    %158 = vector.extract_strided_slice %146 {offsets = [0, 0], sizes = [1, 32], strides = [1, 1]} : vector<4x32xf32> to vector<1x32xf32>
    %159 = vector.broadcast %158 : vector<1x32xf32> to vector<32x32xf32>
    %160 = arith.mulf %152, %159 : vector<32x32xf32>
    %161 = vector.extract_strided_slice %146 {offsets = [1, 0], sizes = [1, 32], strides = [1, 1]} : vector<4x32xf32> to vector<1x32xf32>
    %162 = vector.broadcast %161 : vector<1x32xf32> to vector<32x32xf32>
    %163 = arith.mulf %145, %162 : vector<32x32xf32>
    %164 = arith.addf %160, %163 : vector<32x32xf32>
    %165 = vector.extract_strided_slice %146 {offsets = [2, 0], sizes = [1, 32], strides = [1, 1]} : vector<4x32xf32> to vector<1x32xf32>
    %166 = vector.broadcast %165 : vector<1x32xf32> to vector<32x32xf32>
    %167 = arith.mulf %157, %166 : vector<32x32xf32>
    %168 = arith.addf %164, %167 : vector<32x32xf32>
    %169 = vector.extract_strided_slice %146 {offsets = [3, 0], sizes = [1, 32], strides = [1, 1]} : vector<4x32xf32> to vector<1x32xf32>
    %170 = vector.broadcast %169 : vector<1x32xf32> to vector<32x32xf32>
    %171 = arith.addf %168, %170 : vector<32x32xf32>
    %172 = vector.extract_strided_slice %147 {offsets = [0, 0], sizes = [32, 32], strides = [1, 1]} : vector<33x32xf32> to vector<32x32xf32>
    %cst_47 = arith.constant dense<0.000000e+00> : vector<32x32xf32>
    %173 = tpu.matmul %171, %172, %cst_47 {dimension_numbers = #tpu.dot_dimension_numbers<[1], [0], [0], [1], [0, 0, 1, 1], [], []>} : vector<32x32xf32>, vector<32x32xf32>, vector<32x32xf32> -> vector<32x32xf32>
    %174 = vector.extract_strided_slice %147 {offsets = [32, 0], sizes = [1, 32], strides = [1, 1]} : vector<33x32xf32> to vector<1x32xf32>
    %175 = vector.broadcast %174 : vector<1x32xf32> to vector<32x32xf32>
    %176 = arith.addf %173, %175 : vector<32x32xf32>
    %c0_48 = arith.constant 0 : index
    %c0_49 = arith.constant 0 : index
    %177 = vector.load %arg12[%c0_48, %c0_49] : memref<33x64xf32, #tpu.memory_space<vmem>>, vector<33x64xf32>
    %c0_50 = arith.constant 0 : index
    %c0_51 = arith.constant 0 : index
    %178 = vector.load %arg13[%c0_50, %c0_51] : memref<65x128xf32, #tpu.memory_space<vmem>>, vector<65x128xf32>
    %179 = vector.extract_strided_slice %177 {offsets = [0, 0], sizes = [32, 64], strides = [1, 1]} : vector<33x64xf32> to vector<32x64xf32>
    %cst_52 = arith.constant dense<0.000000e+00> : vector<32x64xf32>
    %180 = tpu.matmul %176, %179, %cst_52 {dimension_numbers = #tpu.dot_dimension_numbers<[1], [0], [0], [1], [0, 0, 1, 1], [], []>} : vector<32x32xf32>, vector<32x64xf32>, vector<32x64xf32> -> vector<32x64xf32>
    %181 = vector.extract_strided_slice %177 {offsets = [32, 0], sizes = [1, 64], strides = [1, 1]} : vector<33x64xf32> to vector<1x64xf32>
    %182 = vector.broadcast %181 : vector<1x64xf32> to vector<32x64xf32>
    %183 = arith.addf %180, %182 : vector<32x64xf32>
    %cst_53 = arith.constant 0.000000e+00 : f32
    %184 = vector.broadcast %cst_53 : f32 to vector<32x64xf32>
    %185 = arith.maximumf %183, %184 : vector<32x64xf32>
    %186 = vector.extract_strided_slice %178 {offsets = [0, 0], sizes = [64, 128], strides = [1, 1]} : vector<65x128xf32> to vector<64x128xf32>
    %cst_54 = arith.constant dense<0.000000e+00> : vector<32x128xf32>
    %187 = tpu.matmul %185, %186, %cst_54 {dimension_numbers = #tpu.dot_dimension_numbers<[1], [0], [0], [1], [0, 0, 1, 1], [], []>} : vector<32x64xf32>, vector<64x128xf32>, vector<32x128xf32> -> vector<32x128xf32>
    %188 = vector.extract_strided_slice %178 {offsets = [64, 0], sizes = [1, 128], strides = [1, 1]} : vector<65x128xf32> to vector<1x128xf32>
    %189 = vector.broadcast %188 : vector<1x128xf32> to vector<32x128xf32>
    %190 = arith.addf %187, %189 : vector<32x128xf32>
    %c0_55 = arith.constant 0 : index
    %c0_56 = arith.constant 0 : index
    %191 = vector.load %arg14[%c0_55, %c0_56] : memref<32x128xf32, #tpu.memory_space<vmem>>, vector<32x128xf32>
    tpu.vector_store %arg14[%c0_55, %c0_56], %190 {strides = array<i32>} : memref<32x128xf32, #tpu.memory_space<vmem>>, vector<32x128xf32>,
    return
  }
  func.func @transform_0(%arg0: i32) -> (i32, i32) {
    %c0_i32 = arith.constant 0 : i32
    %c0_i32_0 = arith.constant 0 : i32
    return %arg0, %c0_i32 : i32, i32
  }
  func.func @transform_1(%arg0: i32) -> (i32, i32) {
    %c0_i32 = arith.constant 0 : i32
    %c0_i32_0 = arith.constant 0 : i32
    %c0_i32_1 = arith.constant 0 : i32
    return %c0_i32, %c0_i32_0 : i32, i32
  }
  func.func @transform_2(%arg0: i32) -> (i32, i32) {
    %c0_i32 = arith.constant 0 : i32
    %c0_i32_0 = arith.constant 0 : i32
    %c0_i32_1 = arith.constant 0 : i32
    return %c0_i32, %c0_i32_0 : i32, i32
  }
  func.func @transform_3(%arg0: i32) -> (i32, i32) {
    %c0_i32 = arith.constant 0 : i32
    %c0_i32_0 = arith.constant 0 : i32
    %c0_i32_1 = arith.constant 0 : i32
    return %c0_i32, %c0_i32_0 : i32, i32
  }
  func.func @transform_4(%arg0: i32) -> (i32, i32) {
    %c0_i32 = arith.constant 0 : i32
    %c0_i32_0 = arith.constant 0 : i32
    %c0_i32_1 = arith.constant 0 : i32
    return %c0_i32, %c0_i32_0 : i32, i32
  }
  func.func @transform_5(%arg0: i32) -> (i32, i32) {
    %c0_i32 = arith.constant 0 : i32
    %c0_i32_0 = arith.constant 0 : i32
    %c0_i32_1 = arith.constant 0 : i32
    return %c0_i32, %c0_i32_0 : i32, i32
  }
  func.func @transform_6(%arg0: i32) -> (i32, i32) {
    %c0_i32 = arith.constant 0 : i32
    %c0_i32_0 = arith.constant 0 : i32
    %c0_i32_1 = arith.constant 0 : i32
    return %c0_i32, %c0_i32_0 : i32, i32
  }
  func.func @transform_7(%arg0: i32) -> (i32, i32) {
    %c0_i32 = arith.constant 0 : i32
    %c0_i32_0 = arith.constant 0 : i32
    %c0_i32_1 = arith.constant 0 : i32
    return %c0_i32, %c0_i32_0 : i32, i32
  }
  func.func @transform_8(%arg0: i32) -> (i32, i32) {
    %c0_i32 = arith.constant 0 : i32
    %c0_i32_0 = arith.constant 0 : i32
    %c0_i32_1 = arith.constant 0 : i32
    return %c0_i32, %c0_i32_0 : i32, i32
  }
  func.func @transform_9(%arg0: i32) -> (i32, i32) {
    %c0_i32 = arith.constant 0 : i32
    %c0_i32_0 = arith.constant 0 : i32
    %c0_i32_1 = arith.constant 0 : i32
    return %c0_i32, %c0_i32_0 : i32, i32
  }
  func.func @transform_10(%arg0: i32) -> (i32, i32) {
    %c0_i32 = arith.constant 0 : i32
    %c0_i32_0 = arith.constant 0 : i32
    %c0_i32_1 = arith.constant 0 : i32
    return %c0_i32, %c0_i32_0 : i32, i32
  }
  func.func @transform_11(%arg0: i32) -> (i32, i32) {
    %c0_i32 = arith.constant 0 : i32
    %c0_i32_0 = arith.constant 0 : i32
    %c0_i32_1 = arith.constant 0 : i32
    return %c0_i32, %c0_i32_0 : i32, i32
  }
  func.func @transform_12(%arg0: i32) -> (i32, i32) {
    %c0_i32 = arith.constant 0 : i32
    %c0_i32_0 = arith.constant 0 : i32
    %c0_i32_1 = arith.constant 0 : i32
    return %c0_i32, %c0_i32_0 : i32, i32
  }
  func.func @transform_13(%arg0: i32) -> (i32, i32) {
    %c0_i32 = arith.constant 0 : i32
    %c0_i32_0 = arith.constant 0 : i32
    return %arg0, %c0_i32 : i32, i32
  }
}

</mosaic_0001>

<llo_original>
// kernel: acoustic_encoder_forward.1
$region0: #{acoustic_encoder_forward.1}
  #allocation0 [shape = 'u32[]', space=smem, size = 0x4, offset = 0x4, fixed_abs, tag = 'smem constant byte address 0x4 - core index']
  #allocation1 [shape = 'u32[144,128]{1,0:T(1,128)}', space=vmem, size = 0x12000, scoped, tag = 'internal scratch']
  %s0 = inlined_call_operand.vmem [shape: f32[32,16], index: 0, kind: input, shape index: {}]
  %s1 = inlined_call_operand.vmem [shape: f32[4,16], index: 1, kind: input, shape index: {}]
  %s2 = inlined_call_operand.vmem [shape: f32[17,32], index: 2, kind: input, shape index: {}]
  %s3 = inlined_call_operand.vmem [shape: f32[4,32], index: 3, kind: input, shape index: {}]
  %s4 = inlined_call_operand.vmem [shape: f32[33,32], index: 4, kind: input, shape index: {}]
  %s5 = inlined_call_operand.vmem [shape: f32[4,32], index: 5, kind: input, shape index: {}]
  %s6 = inlined_call_operand.vmem [shape: f32[33,32], index: 6, kind: input, shape index: {}]
  %s7 = inlined_call_operand.vmem [shape: f32[4,32], index: 7, kind: input, shape index: {}]
  %s8 = inlined_call_operand.vmem [shape: f32[33,32], index: 8, kind: input, shape index: {}]
  %s9 = inlined_call_operand.vmem [shape: f32[4,32], index: 9, kind: input, shape index: {}]
  %s10 = inlined_call_operand.vmem [shape: f32[33,32], index: 10, kind: input, shape index: {}]
  %s11 = inlined_call_operand.vmem [shape: f32[33,64], index: 11, kind: input, shape index: {}]
  %s12 = inlined_call_operand.vmem [shape: f32[65,128], index: 12, kind: input, shape index: {}]
  %s13 = inlined_call_operand.vmem [shape: f32[32,128], index: 13, kind: output, shape index: {}]
  %s14 = sld [smem:[#allocation0]]
  $region62: #{acoustic_encoder_forward.1} parent=0
    _
  %s16 = ssub.s32 1, %s14
  %s17 = scalar_select 0, %s16, %s14
  // Predicated region
  $region2: #{acoustic_encoder_forward.1} parent=0 // pred_check
    _
  $region3: #{acoustic_encoder_forward.1} parent=0 // pred_check_branch
    %19 = sbr.rel (0) target = $region5
  $region4: #{acoustic_encoder_forward.1} parent=0 // pred_region
    _
  $region5: #{acoustic_encoder_forward.1} parent=0 // pred_fallthru
    _
  // Predicated region
  $region6: #{acoustic_encoder_forward.1} parent=0 // pred_check
    _
  $region7: #{acoustic_encoder_forward.1} parent=0 // pred_check_branch
    %21 = sbr.rel (0) target = $region9
  $region8: #{acoustic_encoder_forward.1} parent=0 // pred_region
    _
  $region9: #{acoustic_encoder_forward.1} parent=0 // pred_fallthru
    _
  // Predicated region
  $region10: #{acoustic_encoder_forward.1} parent=0 // pred_check
    _
  $region11: #{acoustic_encoder_forward.1} parent=0 // pred_check_branch
    %23 = sbr.rel (0) target = $region13
  $region12: #{acoustic_encoder_forward.1} parent=0 // pred_region
    _
  $region13: #{acoustic_encoder_forward.1} parent=0 // pred_fallthru
    _
  // Predicated region
  $region14: #{acoustic_encoder_forward.1} parent=0 // pred_check
    _
  $region15: #{acoustic_encoder_forward.1} parent=0 // pred_check_branch
    %25 = sbr.rel (0) target = $region17
  $region16: #{acoustic_encoder_forward.1} parent=0 // pred_region
    _
  $region17: #{acoustic_encoder_forward.1} parent=0 // pred_fallthru
    _
  // Predicated region
  $region18: #{acoustic_encoder_forward.1} parent=0 // pred_check
    _
  $region19: #{acoustic_encoder_forward.1} parent=0 // pred_check_branch
    %27 = sbr.rel (0) target = $region21
  $region20: #{acoustic_encoder_forward.1} parent=0 // pred_region
    _
  $region21: #{acoustic_encoder_forward.1} parent=0 // pred_fallthru
    _
  // Predicated region
  $region22: #{acoustic_encoder_forward.1} parent=0 // pred_check
    _
  $region23: #{acoustic_encoder_forward.1} parent=0 // pred_check_branch
    %29 = sbr.rel (0) target = $region25
  $region24: #{acoustic_encoder_forward.1} parent=0 // pred_region
    _
  $region25: #{acoustic_encoder_forward.1} parent=0 // pred_fallthru
    _
  // Predicated region
  $region26: #{acoustic_encoder_forward.1} parent=0 // pred_check
    _
  $region27: #{acoustic_encoder_forward.1} parent=0 // pred_check_branch
    %31 = sbr.rel (0) target = $region29
  $region28: #{acoustic_encoder_forward.1} parent=0 // pred_region
    _
  $region29: #{acoustic_encoder_forward.1} parent=0 // pred_fallthru
    _
  // Predicated region
  $region30: #{acoustic_encoder_forward.1} parent=0 // pred_check
    _
  $region31: #{acoustic_encoder_forward.1} parent=0 // pred_check_branch
    %33 = sbr.rel (0) target = $region33
  $region32: #{acoustic_encoder_forward.1} parent=0 // pred_region
    _
  $region33: #{acoustic_encoder_forward.1} parent=0 // pred_fallthru
    _
  // Predicated region
  $region34: #{acoustic_encoder_forward.1} parent=0 // pred_check
    _
  $region35: #{acoustic_encoder_forward.1} parent=0 // pred_check_branch
    %35 = sbr.rel (0) target = $region37
  $region36: #{acoustic_encoder_forward.1} parent=0 // pred_region
    _
  $region37: #{acoustic_encoder_forward.1} parent=0 // pred_fallthru
    _
  // Predicated region
  $region38: #{acoustic_encoder_forward.1} parent=0 // pred_check
    _
  $region39: #{acoustic_encoder_forward.1} parent=0 // pred_check_branch
    %37 = sbr.rel (0) target = $region41
  $region40: #{acoustic_encoder_forward.1} parent=0 // pred_region
    _
  $region41: #{acoustic_encoder_forward.1} parent=0 // pred_fallthru
    _
  // Predicated region
  $region42: #{acoustic_encoder_forward.1} parent=0 // pred_check
    _
  $region43: #{acoustic_encoder_forward.1} parent=0 // pred_check_branch
    %39 = sbr.rel (0) target = $region45
  $region44: #{acoustic_encoder_forward.1} parent=0 // pred_region
    _
  $region45: #{acoustic_encoder_forward.1} parent=0 // pred_fallthru
    _
  // Predicated region
  $region46: #{acoustic_encoder_forward.1} parent=0 // pred_check
    _
  $region47: #{acoustic_encoder_forward.1} parent=0 // pred_check_branch
    %41 = sbr.rel (0) target = $region49
  $region48: #{acoustic_encoder_forward.1} parent=0 // pred_region
    _
  $region49: #{acoustic_encoder_forward.1} parent=0 // pred_fallthru
    _
  // Predicated region
  $region50: #{acoustic_encoder_forward.1} parent=0 // pred_check
    _
  $region51: #{acoustic_encoder_forward.1} parent=0 // pred_check_branch
    %43 = sbr.rel (0) target = $region53
  $region52: #{acoustic_encoder_forward.1} parent=0 // pred_region
    _
  $region53: #{acoustic_encoder_forward.1} parent=0 // pred_fallthru
    _
  %v44 = vld [vmem:[%s0] sm:$0xff]
  %v45 = vld [vmem:[%s0 + $0x8] sm:$0xff]
  %v46 = vld [vmem:[%s0 + $0x10] sm:$0xff]
  %v47 = vld [vmem:[%s0 + $0x18] sm:$0xff]
  %v48 = vlaneseq
  %v49 = vshrl.u32 %v48, 7
  %v50 = vadd.s32 %v49, 8
  %v51 = vadd.s32 %v49, 16
  %v52 = vadd.s32 %v49, 24
  %vm53 = vcmp.lt.s32.totalorder %v49, 0
  %v54 = vsub.s32 0, %v49
  %v55 = vsel %vm53, %v54, %v49
  %v56 = vshrl.u32 %v55, 4
  %v57 = vand.u32 %v55, 15
  %v58 = vsub.s32 0, %v57
  %v59 = vsel %vm53, %v58, %v57
  %vm60 = vcmp.lt.s32.totalorder %v50, 0
  %v61 = vsub.s32 0, %v50
  %v62 = vsel %vm60, %v61, %v50
  %v63 = vshrl.u32 %v62, 4
  %v64 = vand.u32 %v62, 15
  %v65 = vsub.s32 0, %v64
  %v66 = vsel %vm60, %v65, %v64
  %vm67 = vcmp.lt.s32.totalorder %v51, 0
  %v68 = vsub.s32 0, %v51
  %v69 = vsel %vm67, %v68, %v51
  %v70 = vshrl.u32 %v69, 4
  %v71 = vand.u32 %v69, 15
  %v72 = vsub.s32 0, %v71
  %v73 = vsel %vm67, %v72, %v71
  %vm74 = vcmp.lt.s32.totalorder %v52, 0
  %v75 = vsub.s32 0, %v52
  %v76 = vsel %vm74, %v75, %v52
  %v77 = vshrl.u32 %v76, 4
  %v78 = vand.u32 %v76, 15
  %v79 = vsub.s32 0, %v78
  %v80 = vsel %vm74, %v79, %v78
  %vm81 = vcmp.ne.s32.totalorder %v59, 0
  %vm82 = vcmp.ne.s32.totalorder %v66, 0
  %vm83 = vcmp.ne.s32.totalorder %v73, 0
  %vm84 = vcmp.ne.s32.totalorder %v80, 0
  %vm85 = vcmp.lt.s32.totalorder %v59, 0
  %vm86 = vcmp.lt.s32.totalorder %v66, 0
  %vm87 = vcmp.lt.s32.totalorder %v73, 0
  %vm88 = vcmp.lt.s32.totalorder %v80, 0
  %vm89 = vmand %vm85, %vm81
  %vm90 = vmand %vm86, %vm82
  %vm91 = vmand %vm87, %vm83
  %vm92 = vmand %vm88, %vm84
  %v93 = vadd.s32 %v59, 16
  %v94 = vadd.s32 %v66, 16
  %v95 = vadd.s32 %v73, 16
  %v96 = vadd.s32 %v80, 16
  %v97 = vsel %vm89, %v93, %v59
  %v98 = vsel %vm90, %v94, %v66
  %v99 = vsel %vm91, %v95, %v73
  %v100 = vsel %vm92, %v96, %v80
  %vm101 = vcmp.ne.s32.totalorder %v97, 0
  %vm102 = vcmp.ne.s32.totalorder %v98, 0
  %vm103 = vcmp.ne.s32.totalorder %v99, 0
  %vm104 = vcmp.ne.s32.totalorder %v100, 0
  %vm105 = vcmp.ne.s32.totalorder %v97, 15
  %vm106 = vcmp.ne.s32.totalorder %v98, 15
  %vm107 = vcmp.ne.s32.totalorder %v99, 15
  %vm108 = vcmp.ne.s32.totalorder %v100, 15
  %v109 = vld [vmem:[%s1] sm:$0xf]
  %v110 = vld [vmem:[%s2] sm:$0xff]
  %v111 = vld [vmem:[%s2 + $0x8] sm:$0xff]
  %v112 = vld [vmem:[%s2 + $0x10] sm:$0x1]
  %v113 = vrot.slane %v44, 7
  %v114 = vrot.slane %v45, 7
  %v115 = vrot.slane %v46, 7
  %v116 = vrot.slane %v47, 7
  %vm117 = vcmp.lt.s32.totalorder %v49, 1
  %v118 = vsel %vm117, %v115, %v116
  %v119 = vsel %vm117, %v114, %v115
  %v120 = vsel %vm117, %v113, %v114
  %v121 = vsel %vm117, %v116, %v113
  %v122 = vsel %vm101, 1, 0
  %v123 = vsel %vm102, 1, 0
  %v124 = vsel %vm103, 1, 0
  %v125 = vsel %vm104, 1, 0
  %vm126 = vcmp.eq.s32.totalorder %v122, 1
  %vm127 = vcmp.eq.s32.totalorder %v123, 1
  %vm128 = vcmp.eq.s32.totalorder %v124, 1
  %vm129 = vcmp.eq.s32.totalorder %v125, 1
  %v130 = vsel %vm126, %v121, 0.0
  %v131 = vsel %vm127, %v120, 0.0
  %v132 = vsel %vm128, %v119, 0.0
  %v133 = vsel %vm129, %v118, 0.0
  %v134 = vrot.slane %v44, 1
  %v135 = vrot.slane %v45, 1
  %v136 = vrot.slane %v46, 1
  %v137 = vrot.slane %v47, 1
  %vm138 = vcmp.lt.s32.totalorder %v49, 7
  %v139 = vsel %vm138, %v136, %v137
  %v140 = vsel %vm138, %v135, %v136
  %v141 = vsel %vm138, %v134, %v135
  %v142 = vsel %vm138, %v137, %v134
  %v143 = vsel %vm105, 1, 0
  %v144 = vsel %vm106, 1, 0
  %v145 = vsel %vm107, 1, 0
  %v146 = vsel %vm108, 1, 0
  %vm147 = vcmp.eq.s32.totalorder %v143, 1
  %vm148 = vcmp.eq.s32.totalorder %v144, 1
  %vm149 = vcmp.eq.s32.totalorder %v145, 1
  %vm150 = vcmp.eq.s32.totalorder %v146, 1
  %v151 = vsel %vm147, %v141, 0.0
  %v152 = vsel %vm148, %v140, 0.0
  %v153 = vsel %vm149, %v139, 0.0
  %v154 = vsel %vm150, %v142, 0.0
  %v155 = vlaneseq
  %v156 = vshrl.u32 %v155, 7
  %v157 = vsub.s32 0, %v156
  %v158 = vrot.slane %v109, %v157
  %v159 = vmul.f32 %v130, %v158
  %v160 = vmul.f32 %v131, %v158
  %v161 = vmul.f32 %v132, %v158
  %v162 = vmul.f32 %v133, %v158
  %v163 = vlaneseq
  %v164 = vshrl.u32 %v163, 7
  %v165 = vsub.s32 1, %v164
  %v166 = vrot.slane %v109, %v165
  %v167 = vmul.f32 %v44, %v166
  %v168 = vmul.f32 %v45, %v166
  %v169 = vmul.f32 %v46, %v166
  %v170 = vmul.f32 %v47, %v166
  %v171 = vadd.f32 %v159, %v167
  %v172 = vadd.f32 %v160, %v168
  %v173 = vadd.f32 %v161, %v169
  %v174 = vadd.f32 %v162, %v170
  %v175 = vlaneseq
  %v176 = vshrl.u32 %v175, 7
  %v177 = vsub.s32 2, %v176
  %v178 = vrot.slane %v109, %v177
  %v179 = vmul.f32 %v151, %v178
  %v180 = vmul.f32 %v152, %v178
  %v181 = vmul.f32 %v153, %v178
  %v182 = vmul.f32 %v154, %v178
  %v183 = vadd.f32 %v171, %v179
  %v184 = vadd.f32 %v172, %v180
  %v185 = vadd.f32 %v173, %v181
  %v186 = vadd.f32 %v174, %v182
  %v187 = vlaneseq
  %v188 = vshrl.u32 %v187, 7
  %v189 = vsub.s32 3, %v188
  %v190 = vrot.slane %v109, %v189
  %v191 = vadd.f32 %v183, %v190
  %v192 = vadd.f32 %v184, %v190
  %v193 = vadd.f32 %v185, %v190
  %v194 = vadd.f32 %v186, %v190
  %v195 = vlaneseq
  %v196 = vshrl.u32 %v195, 7
  %v197 = vsub.s32 0, %v196
  %v198 = vrot.slane %v112, %v197
  %vm199 = vcmask 130048
  %v201 = vsel %vm199, %v191, 0
  %v204 = vsel %vm199, %v192, 0
  %v207 = vsel %vm199, %v193, 0
  %v210 = vsel %vm199, %v194, 0
  %212 = vmatprep.subr.mxu0 0.0
  %213 = vmatpush1.msra.mxu0 %v110
  %214 = vmatprep.subr.mxu0 0.0
  %215 = vmatpush1.msra.mxu0 %v111
  %216 = vmatprep.subr.mxu0 0.0
  %217 = vmatpush1.msra.mxu0 0.0
  %218 = vmatprep.subr.mxu0 0.0
  %219 = vmatpush1.msra.mxu0 0.0
  %220 = vmatprep.subr.mxu0 0.0
  %221 = vmatpush1.msra.mxu0 0.0
  %222 = vmatprep.subr.mxu0 0.0
  %223 = vmatpush1.msra.mxu0 0.0
  %224 = vmatprep.subr.mxu0 0.0
  %225 = vmatpush1.msra.mxu0 0.0
  %226 = vmatprep.subr.mxu0 0.0
  %227 = vmatpush1.msra.mxu0 0.0
  %228 = vmatprep.subr.mxu0 0.0
  %229 = vmatpush1.msra.mxu0 0.0
  %230 = vmatprep.subr.mxu0 0.0
  %231 = vmatpush1.msra.mxu0 0.0
  %232 = vmatprep.subr.mxu0 0.0
  %233 = vmatpush1.msra.mxu0 0.0
  %234 = vmatprep.subr.mxu0 0.0
  %235 = vmatpush1.msra.mxu0 0.0
  %236 = vmatprep.subr.mxu0 0.0
  %237 = vmatpush1.msra.mxu0 0.0
  %238 = vmatprep.subr.mxu0 0.0
  %239 = vmatpush1.msra.mxu0 0.0
  %240 = vmatprep.subr.mxu0 0.0
  %241 = vmatpush1.msra.mxu0 0.0
  %242 = vmatprep.subr.mxu0 0.0
  %243 = vmatpush1.msra.mxu0 0.0
  %244 = vmatprep.subr.mxu0 0.0
  %245 = vmatpush1.msra.mxu0 0.0
  %246 = vmatprep.subr.mxu0 0.0
  %247 = vmatpush1.msra.mxu0 0.0
  %248 = vmatprep.subr.mxu0 0.0
  %249 = vmatpush1.msra.mxu0 0.0
  %250 = vmatprep.subr.mxu0 0.0
  %251 = vmatpush1.msra.mxu0 0.0
  %252 = vmatprep.subr.mxu0 0.0
  %253 = vmatpush1.msra.mxu0 0.0
  %254 = vmatprep.subr.mxu0 0.0
  %255 = vmatpush1.msra.mxu0 0.0
  %256 = vmatprep.subr.mxu0 0.0
  %257 = vmatpush1.msra.mxu0 0.0
  %258 = vmatprep.subr.mxu0 0.0
  %259 = vmatpush1.msra.mxu0 0.0
  %260 = vmatprep.subr.mxu0 0.0
  %261 = vmatpush1.msra.mxu0 0.0
  %262 = vmatprep.subr.mxu0 0.0
  %263 = vmatpush1.msra.mxu0 0.0
  %264 = vmatprep.subr.mxu0 0.0
  %265 = vmatpush1.msra.mxu0 0.0
  %266 = vmatprep.subr.mxu0 0.0
  %267 = vmatpush1.msra.mxu0 0.0
  %268 = vmatprep.subr.mxu0 0.0
  %269 = vmatpush1.msra.mxu0 0.0
  %270 = vmatprep.subr.mxu0 0.0
  %271 = vmatpush1.msra.mxu0 0.0
  %272 = vmatprep.subr.mxu0 0.0
  %273 = vmatpush1.msra.mxu0 0.0
  %274 = vmatprep.subr.mxu0 0.0
  %275 = vmatpush1.msra.mxu0 0.0
  %276 = vmatprep.mubr.f32.mxu0 0.0
  %277 = vmatmul.mubr.f32.gmra.mrb[0].mxu0 %v201
  %v278 = vpop.f32.mrb[0].mxu0
  %v279 = vadd.f32 %v198, %v278
  %v280 = vpop.f32.mrb[0].mxu0
  %281 = vmatprep.mubr.f32.mxu0 0.0
  %282 = vmatmul.mubr.f32.gmra.mrb[0].mxu0 %v204
  %v283 = vpop.f32.mrb[0].mxu0
  %v284 = vadd.f32 %v198, %v283
  %v285 = vpop.f32.mrb[0].mxu0
  %286 = vmatprep.mubr.f32.mxu0 0.0
  %287 = vmatmul.mubr.f32.gmra.mrb[0].mxu0 %v207
  %v288 = vpop.f32.mrb[0].mxu0
  %v289 = vadd.f32 %v198, %v288
  %v290 = vpop.f32.mrb[0].mxu0
  %291 = vmatprep.mubr.f32.mxu0 0.0
  %292 = vmatmul.mubr.f32.gmra.mrb[0].mxu0 %v210
  %v293 = vpop.f32.mrb[0].mxu0
  %v294 = vadd.f32 %v198, %v293
  %v295 = vpop.f32.mrb[0].mxu0
  %296 = vdwg.mxu0
  %v297 = vld [vmem:[%s3] sm:$0xf]
  %v298 = vld [vmem:[%s4] sm:$0xff]
  %v299 = vld [vmem:[%s4 + $0x8] sm:$0xff]
  %v300 = vld [vmem:[%s4 + $0x10] sm:$0xff]
  %v301 = vld [vmem:[%s4 + $0x18] sm:$0xff]
  %v302 = vld [vmem:[%s4 + $0x20] sm:$0x1]
  %v303 = vrot.slane %v279, 7
  %v304 = vrot.slane %v284, 7
  %v305 = vrot.slane %v289, 7
  %v306 = vrot.slane %v294, 7
  %v307 = vsel %vm117, %v305, %v306
  %v308 = vsel %vm117, %v304, %v305
  %v309 = vsel %vm117, %v303, %v304
  %v310 = vsel %vm117, %v306, %v303
  %v311 = vsel %vm126, %v310, 0.0
  %v312 = vsel %vm127, %v309, 0.0
  %v313 = vsel %vm128, %v308, 0.0
  %v314 = vsel %vm129, %v307, 0.0
  %v315 = vrot.slane %v279, 1
  %v316 = vrot.slane %v284, 1
  %v317 = vrot.slane %v289, 1
  %v318 = vrot.slane %v294, 1
  %v319 = vsel %vm138, %v317, %v318
  %v320 = vsel %vm138, %v316, %v317
  %v321 = vsel %vm138, %v315, %v316
  %v322 = vsel %vm138, %v318, %v315
  %v323 = vsel %vm147, %v321, 0.0
  %v324 = vsel %vm148, %v320, 0.0
  %v325 = vsel %vm149, %v319, 0.0
  %v326 = vsel %vm150, %v322, 0.0
  %v327 = vlaneseq
  %v328 = vshrl.u32 %v327, 7
  %v329 = vsub.s32 0, %v328
  %v330 = vrot.slane %v297, %v329
  %v331 = vmul.f32 %v311, %v330
  %v332 = vmul.f32 %v312, %v330
  %v333 = vmul.f32 %v313, %v330
  %v334 = vmul.f32 %v314, %v330
  %v335 = vlaneseq
  %v336 = vshrl.u32 %v335, 7
  %v337 = vsub.s32 1, %v336
  %v338 = vrot.slane %v297, %v337
  %v339 = vmul.f32 %v279, %v338
  %v340 = vmul.f32 %v284, %v338
  %v341 = vmul.f32 %v289, %v338
  %v342 = vmul.f32 %v294, %v338
  %v343 = vadd.f32 %v331, %v339
  %v344 = vadd.f32 %v332, %v340
  %v345 = vadd.f32 %v333, %v341
  %v346 = vadd.f32 %v334, %v342
  %v347 = vlaneseq
  %v348 = vshrl.u32 %v347, 7
  %v349 = vsub.s32 2, %v348
  %v350 = vrot.slane %v297, %v349
  %v351 = vmul.f32 %v323, %v350
  %v352 = vmul.f32 %v324, %v350
  %v353 = vmul.f32 %v325, %v350
  %v354 = vmul.f32 %v326, %v350
  %v355 = vadd.f32 %v343, %v351
  %v356 = vadd.f32 %v344, %v352
  %v357 = vadd.f32 %v345, %v353
  %v358 = vadd.f32 %v346, %v354
  %v359 = vlaneseq
  %v360 = vshrl.u32 %v359, 7
  %v361 = vsub.s32 3, %v360
  %v362 = vrot.slane %v297, %v361
  %v363 = vadd.f32 %v355, %v362
  %v364 = vadd.f32 %v356, %v362
  %v365 = vadd.f32 %v357, %v362
  %v366 = vadd.f32 %v358, %v362
  %v367 = vlaneseq
  %v368 = vshrl.u32 %v367, 7
  %v369 = vsub.s32 0, %v368
  %v370 = vrot.slane %v302, %v369
  %vm371 = vcmask 261120
  %v373 = vsel %vm371, %v363, 0
  %v376 = vsel %vm371, %v364, 0
  %v379 = vsel %vm371, %v365, 0
  %v382 = vsel %vm371, %v366, 0
  %384 = vmatprep.subr.mxu0 0.0
  %385 = vmatpush1.msra.mxu0 %v298
  %386 = vmatprep.subr.mxu0 0.0
  %387 = vmatpush1.msra.mxu0 %v299
  %388 = vmatprep.subr.mxu0 0.0
  %389 = vmatpush1.msra.mxu0 %v300
  %390 = vmatprep.subr.mxu0 0.0
  %391 = vmatpush1.msra.mxu0 %v301
  %392 = vmatprep.subr.mxu0 0.0
  %393 = vmatpush1.msra.mxu0 0.0
  %394 = vmatprep.subr.mxu0 0.0
  %395 = vmatpush1.msra.mxu0 0.0
  %396 = vmatprep.subr.mxu0 0.0
  %397 = vmatpush1.msra.mxu0 0.0
  %398 = vmatprep.subr.mxu0 0.0
  %399 = vmatpush1.msra.mxu0 0.0
  %400 = vmatprep.subr.mxu0 0.0
  %401 = vmatpush1.msra.mxu0 0.0
  %402 = vmatprep.subr.mxu0 0.0
  %403 = vmatpush1.msra.mxu0 0.0
  %404 = vmatprep.subr.mxu0 0.0
  %405 = vmatpush1.msra.mxu0 0.0
  %406 = vmatprep.subr.mxu0 0.0
  %407 = vmatpush1.msra.mxu0 0.0
  %408 = vmatprep.subr.mxu0 0.0
  %409 = vmatpush1.msra.mxu0 0.0
  %410 = vmatprep.subr.mxu0 0.0
  %411 = vmatpush1.msra.mxu0 0.0
  %412 = vmatprep.subr.mxu0 0.0
  %413 = vmatpush1.msra.mxu0 0.0
  %414 = vmatprep.subr.mxu0 0.0
  %415 = vmatpush1.msra.mxu0 0.0
  %416 = vmatprep.subr.mxu0 0.0
  %417 = vmatpush1.msra.mxu0 0.0
  %418 = vmatprep.subr.mxu0 0.0
  %419 = vmatpush1.msra.mxu0 0.0
  %420 = vmatprep.subr.mxu0 0.0
  %421 = vmatpush1.msra.mxu0 0.0
  %422 = vmatprep.subr.mxu0 0.0
  %423 = vmatpush1.msra.mxu0 0.0
  %424 = vmatprep.subr.mxu0 0.0
  %425 = vmatpush1.msra.mxu0 0.0
  %426 = vmatprep.subr.mxu0 0.0
  %427 = vmatpush1.msra.mxu0 0.0
  %428 = vmatprep.subr.mxu0 0.0
  %429 = vmatpush1.msra.mxu0 0.0
  %430 = vmatprep.subr.mxu0 0.0
  %431 = vmatpush1.msra.mxu0 0.0
  %432 = vmatprep.subr.mxu0 0.0
  %433 = vmatpush1.msra.mxu0 0.0
  %434 = vmatprep.subr.mxu0 0.0
  %435 = vmatpush1.msra.mxu0 0.0
  %436 = vmatprep.subr.mxu0 0.0
  %437 = vmatpush1.msra.mxu0 0.0
  %438 = vmatprep.subr.mxu0 0.0
  %439 = vmatpush1.msra.mxu0 0.0
  %440 = vmatprep.subr.mxu0 0.0
  %441 = vmatpush1.msra.mxu0 0.0
  %442 = vmatprep.subr.mxu0 0.0
  %443 = vmatpush1.msra.mxu0 0.0
  %444 = vmatprep.subr.mxu0 0.0
  %445 = vmatpush1.msra.mxu0 0.0
  %446 = vmatprep.subr.mxu0 0.0
  %447 = vmatpush1.msra.mxu0 0.0
  %448 = vmatprep.mubr.f32.mxu0 0.0
  %449 = vmatmul.mubr.f32.gmra.mrb[0].mxu0 %v373
  %v450 = vpop.f32.mrb[0].mxu0
  %v451 = vadd.f32 %v370, %v450
  %v452 = vpop.f32.mrb[0].mxu0
  %453 = vmatprep.mubr.f32.mxu0 0.0
  %454 = vmatmul.mubr.f32.gmra.mrb[0].mxu0 %v376
  %v455 = vpop.f32.mrb[0].mxu0
  %v456 = vadd.f32 %v370, %v455
  %v457 = vpop.f32.mrb[0].mxu0
  %458 = vmatprep.mubr.f32.mxu0 0.0
  %459 = vmatmul.mubr.f32.gmra.mrb[0].mxu0 %v379
  %v460 = vpop.f32.mrb[0].mxu0
  %v461 = vadd.f32 %v370, %v460
  %v462 = vpop.f32.mrb[0].mxu0
  %463 = vmatprep.mubr.f32.mxu0 0.0
  %464 = vmatmul.mubr.f32.gmra.mrb[0].mxu0 %v382
  %v465 = vpop.f32.mrb[0].mxu0
  %v466 = vadd.f32 %v370, %v465
  %v467 = vpop.f32.mrb[0].mxu0
  %468 = vdwg.mxu0
  %v469 = vld [vmem:[%s5] sm:$0xf]
  %v470 = vld [vmem:[%s6] sm:$0xff]
  %v471 = vld [vmem:[%s6 + $0x8] sm:$0xff]
  %v472 = vld [vmem:[%s6 + $0x10] sm:$0xff]
  %v473 = vld [vmem:[%s6 + $0x18] sm:$0xff]
  %v474 = vld [vmem:[%s6 + $0x20] sm:$0x1]
  %v475 = vrot.slane %v451, 7
  %v476 = vrot.slane %v456, 7
  %v477 = vrot.slane %v461, 7
  %v478 = vrot.slane %v466, 7
  %v479 = vsel %vm117, %v477, %v478
  %v480 = vsel %vm117, %v476, %v477
  %v481 = vsel %vm117, %v475, %v476
  %v482 = vsel %vm117, %v478, %v475
  %v483 = vsel %vm126, %v482, 0.0
  %v484 = vsel %vm127, %v481, 0.0
  %v485 = vsel %vm128, %v480, 0.0
  %v486 = vsel %vm129, %v479, 0.0
  %v487 = vrot.slane %v451, 1
  %v488 = vrot.slane %v456, 1
  %v489 = vrot.slane %v461, 1
  %v490 = vrot.slane %v466, 1
  %v491 = vsel %vm138, %v489, %v490
  %v492 = vsel %vm138, %v488, %v489
  %v493 = vsel %vm138, %v487, %v488
  %v494 = vsel %vm138, %v490, %v487
  %v495 = vsel %vm147, %v493, 0.0
  %v496 = vsel %vm148, %v492, 0.0
  %v497 = vsel %vm149, %v491, 0.0
  %v498 = vsel %vm150, %v494, 0.0
  %v499 = vlaneseq
  %v500 = vshrl.u32 %v499, 7
  %v501 = vsub.s32 0, %v500
  %v502 = vrot.slane %v469, %v501
  %v503 = vmul.f32 %v483, %v502
  %v504 = vmul.f32 %v484, %v502
  %v505 = vmul.f32 %v485, %v502
  %v506 = vmul.f32 %v486, %v502
  %v507 = vlaneseq
  %v508 = vshrl.u32 %v507, 7
  %v509 = vsub.s32 1, %v508
  %v510 = vrot.slane %v469, %v509
  %v511 = vmul.f32 %v451, %v510
  %v512 = vmul.f32 %v456, %v510
  %v513 = vmul.f32 %v461, %v510
  %v514 = vmul.f32 %v466, %v510
  %v515 = vadd.f32 %v503, %v511
  %v516 = vadd.f32 %v504, %v512
  %v517 = vadd.f32 %v505, %v513
  %v518 = vadd.f32 %v506, %v514
  %v519 = vlaneseq
  %v520 = vshrl.u32 %v519, 7
  %v521 = vsub.s32 2, %v520
  %v522 = vrot.slane %v469, %v521
  %v523 = vmul.f32 %v495, %v522
  %v524 = vmul.f32 %v496, %v522
  %v525 = vmul.f32 %v497, %v522
  %v526 = vmul.f32 %v498, %v522
  %v527 = vadd.f32 %v515, %v523
  %v528 = vadd.f32 %v516, %v524
  %v529 = vadd.f32 %v517, %v525
  %v530 = vadd.f32 %v518, %v526
  %v531 = vlaneseq
  %v532 = vshrl.u32 %v531, 7
  %v533 = vsub.s32 3, %v532
  %v534 = vrot.slane %v469, %v533
  %v535 = vadd.f32 %v527, %v534
  %v536 = vadd.f32 %v528, %v534
  %v537 = vadd.f32 %v529, %v534
  %v538 = vadd.f32 %v530, %v534
  %v539 = vlaneseq
  %v540 = vshrl.u32 %v539, 7
  %v541 = vsub.s32 0, %v540
  %v542 = vrot.slane %v474, %v541
  %v544 = vsel %vm371, %v535, 0
  %v547 = vsel %vm371, %v536, 0
  %v550 = vsel %vm371, %v537, 0
  %v553 = vsel %vm371, %v538, 0
  %555 = vmatprep.subr.mxu0 0.0
  %556 = vmatpush1.msra.mxu0 %v470
  %557 = vmatprep.subr.mxu0 0.0
  %558 = vmatpush1.msra.mxu0 %v471
  %559 = vmatprep.subr.mxu0 0.0
  %560 = vmatpush1.msra.mxu0 %v472
  %561 = vmatprep.subr.mxu0 0.0
  %562 = vmatpush1.msra.mxu0 %v473
  %563 = vmatprep.subr.mxu0 0.0
  %564 = vmatpush1.msra.mxu0 0.0
  %565 = vmatprep.subr.mxu0 0.0
  %566 = vmatpush1.msra.mxu0 0.0
  %567 = vmatprep.subr.mxu0 0.0
  %568 = vmatpush1.msra.mxu0 0.0
  %569 = vmatprep.subr.mxu0 0.0
  %570 = vmatpush1.msra.mxu0 0.0
  %571 = vmatprep.subr.mxu0 0.0
  %572 = vmatpush1.msra.mxu0 0.0
  %573 = vmatprep.subr.mxu0 0.0
  %574 = vmatpush1.msra.mxu0 0.0
  %575 = vmatprep.subr.mxu0 0.0
  %576 = vmatpush1.msra.mxu0 0.0
  %577 = vmatprep.subr.mxu0 0.0
  %578 = vmatpush1.msra.mxu0 0.0
  %579 = vmatprep.subr.mxu0 0.0
  %580 = vmatpush1.msra.mxu0 0.0
  %581 = vmatprep.subr.mxu0 0.0
  %582 = vmatpush1.msra.mxu0 0.0
  %583 = vmatprep.subr.mxu0 0.0
  %584 = vmatpush1.msra.mxu0 0.0
  %585 = vmatprep.subr.mxu0 0.0
  %586 = vmatpush1.msra.mxu0 0.0
  %587 = vmatprep.subr.mxu0 0.0
  %588 = vmatpush1.msra.mxu0 0.0
  %589 = vmatprep.subr.mxu0 0.0
  %590 = vmatpush1.msra.mxu0 0.0
  %591 = vmatprep.subr.mxu0 0.0
  %592 = vmatpush1.msra.mxu0 0.0
  %593 = vmatprep.subr.mxu0 0.0
  %594 = vmatpush1.msra.mxu0 0.0
  %595 = vmatprep.subr.mxu0 0.0
  %596 = vmatpush1.msra.mxu0 0.0
  %597 = vmatprep.subr.mxu0 0.0
  %598 = vmatpush1.msra.mxu0 0.0
  %599 = vmatprep.subr.mxu0 0.0
  %600 = vmatpush1.msra.mxu0 0.0
  %601 = vmatprep.subr.mxu0 0.0
  %602 = vmatpush1.msra.mxu0 0.0
  %603 = vmatprep.subr.mxu0 0.0
  %604 = vmatpush1.msra.mxu0 0.0
  %605 = vmatprep.subr.mxu0 0.0
  %606 = vmatpush1.msra.mxu0 0.0
  %607 = vmatprep.subr.mxu0 0.0
  %608 = vmatpush1.msra.mxu0 0.0
  %609 = vmatprep.subr.mxu0 0.0
  %610 = vmatpush1.msra.mxu0 0.0
  %611 = vmatprep.subr.mxu0 0.0
  %612 = vmatpush1.msra.mxu0 0.0
  %613 = vmatprep.subr.mxu0 0.0
  %614 = vmatpush1.msra.mxu0 0.0
  %615 = vmatprep.subr.mxu0 0.0
  %616 = vmatpush1.msra.mxu0 0.0
  %617 = vmatprep.subr.mxu0 0.0
  %618 = vmatpush1.msra.mxu0 0.0
  %619 = vmatprep.mubr.f32.mxu0 0.0
  %620 = vmatmul.mubr.f32.gmra.mrb[0].mxu0 %v544
  %v621 = vpop.f32.mrb[0].mxu0
  %v622 = vadd.f32 %v542, %v621
  %v623 = vpop.f32.mrb[0].mxu0
  %624 = vmatprep.mubr.f32.mxu0 0.0
  %625 = vmatmul.mubr.f32.gmra.mrb[0].mxu0 %v547
  %v626 = vpop.f32.mrb[0].mxu0
  %v627 = vadd.f32 %v542, %v626
  %v628 = vpop.f32.mrb[0].mxu0
  %629 = vmatprep.mubr.f32.mxu0 0.0
  %630 = vmatmul.mubr.f32.gmra.mrb[0].mxu0 %v550
  %v631 = vpop.f32.mrb[0].mxu0
  %v632 = vadd.f32 %v542, %v631
  %v633 = vpop.f32.mrb[0].mxu0
  %634 = vmatprep.mubr.f32.mxu0 0.0
  %635 = vmatmul.mubr.f32.gmra.mrb[0].mxu0 %v553
  %v636 = vpop.f32.mrb[0].mxu0
  %v637 = vadd.f32 %v542, %v636
  %v638 = vpop.f32.mrb[0].mxu0
  %639 = vdwg.mxu0
  %v640 = vld [vmem:[%s7] sm:$0xf]
  %v641 = vld [vmem:[%s8] sm:$0xff]
  %v642 = vld [vmem:[%s8 + $0x8] sm:$0xff]
  %v643 = vld [vmem:[%s8 + $0x10] sm:$0xff]
  %v644 = vld [vmem:[%s8 + $0x18] sm:$0xff]
  %v645 = vld [vmem:[%s8 + $0x20] sm:$0x1]
  %v646 = vrot.slane %v622, 7
  %v647 = vrot.slane %v627, 7
  %v648 = vrot.slane %v632, 7
  %v649 = vrot.slane %v637, 7
  %v650 = vsel %vm117, %v648, %v649
  %v651 = vsel %vm117, %v647, %v648
  %v652 = vsel %vm117, %v646, %v647
  %v653 = vsel %vm117, %v649, %v646
  %v654 = vsel %vm126, %v653, 0.0
  %v655 = vsel %vm127, %v652, 0.0
  %v656 = vsel %vm128, %v651, 0.0
  %v657 = vsel %vm129, %v650, 0.0
  %v658 = vrot.slane %v622, 1
  %v659 = vrot.slane %v627, 1
  %v660 = vrot.slane %v632, 1
  %v661 = vrot.slane %v637, 1
  %v662 = vsel %vm138, %v660, %v661
  %v663 = vsel %vm138, %v659, %v660
  %v664 = vsel %vm138, %v658, %v659
  %v665 = vsel %vm138, %v661, %v658
  %v666 = vsel %vm147, %v664, 0.0
  %v667 = vsel %vm148, %v663, 0.0
  %v668 = vsel %vm149, %v662, 0.0
  %v669 = vsel %vm150, %v665, 0.0
  %v670 = vlaneseq
  %v671 = vshrl.u32 %v670, 7
  %v672 = vsub.s32 0, %v671
  %v673 = vrot.slane %v640, %v672
  %v674 = vmul.f32 %v654, %v673
  %v675 = vmul.f32 %v655, %v673
  %v676 = vmul.f32 %v656, %v673
  %v677 = vmul.f32 %v657, %v673
  %v678 = vlaneseq
  %v679 = vshrl.u32 %v678, 7
  %v680 = vsub.s32 1, %v679
  %v681 = vrot.slane %v640, %v680
  %v682 = vmul.f32 %v622, %v681
  %v683 = vmul.f32 %v627, %v681
  %v684 = vmul.f32 %v632, %v681
  %v685 = vmul.f32 %v637, %v681
  %v686 = vadd.f32 %v674, %v682
  %v687 = vadd.f32 %v675, %v683
  %v688 = vadd.f32 %v676, %v684
  %v689 = vadd.f32 %v677, %v685
  %v690 = vlaneseq
  %v691 = vshrl.u32 %v690, 7
  %v692 = vsub.s32 2, %v691
  %v693 = vrot.slane %v640, %v692
  %v694 = vmul.f32 %v666, %v693
  %v695 = vmul.f32 %v667, %v693
  %v696 = vmul.f32 %v668, %v693
  %v697 = vmul.f32 %v669, %v693
  %v698 = vadd.f32 %v686, %v694
  %v699 = vadd.f32 %v687, %v695
  %v700 = vadd.f32 %v688, %v696
  %v701 = vadd.f32 %v689, %v697
  %v702 = vlaneseq
  %v703 = vshrl.u32 %v702, 7
  %v704 = vsub.s32 3, %v703
  %v705 = vrot.slane %v640, %v704
  %v706 = vadd.f32 %v698, %v705
  %v707 = vadd.f32 %v699, %v705
  %v708 = vadd.f32 %v700, %v705
  %v709 = vadd.f32 %v701, %v705
  %v710 = vlaneseq
  %v711 = vshrl.u32 %v710, 7
  %v712 = vsub.s32 0, %v711
  %v713 = vrot.slane %v645, %v712
  %v715 = vsel %vm371, %v706, 0
  %v718 = vsel %vm371, %v707, 0
  %v721 = vsel %vm371, %v708, 0
  %v724 = vsel %vm371, %v709, 0
  %726 = vmatprep.subr.mxu0 0.0
  %727 = vmatpush1.msra.mxu0 %v641
  %728 = vmatprep.subr.mxu0 0.0
  %729 = vmatpush1.msra.mxu0 %v642
  %730 = vmatprep.subr.mxu0 0.0
  %731 = vmatpush1.msra.mxu0 %v643
  %732 = vmatprep.subr.mxu0 0.0
  %733 = vmatpush1.msra.mxu0 %v644
  %734 = vmatprep.subr.mxu0 0.0
  %735 = vmatpush1.msra.mxu0 0.0
  %736 = vmatprep.subr.mxu0 0.0
  %737 = vmatpush1.msra.mxu0 0.0
  %738 = vmatprep.subr.mxu0 0.0
  %739 = vmatpush1.msra.mxu0 0.0
  %740 = vmatprep.subr.mxu0 0.0
  %741 = vmatpush1.msra.mxu0 0.0
  %742 = vmatprep.subr.mxu0 0.0
  %743 = vmatpush1.msra.mxu0 0.0
  %744 = vmatprep.subr.mxu0 0.0
  %745 = vmatpush1.msra.mxu0 0.0
  %746 = vmatprep.subr.mxu0 0.0
  %747 = vmatpush1.msra.mxu0 0.0
  %748 = vmatprep.subr.mxu0 0.0
  %749 = vmatpush1.msra.mxu0 0.0
  %750 = vmatprep.subr.mxu0 0.0
  %751 = vmatpush1.msra.mxu0 0.0
  %752 = vmatprep.subr.mxu0 0.0
  %753 = vmatpush1.msra.mxu0 0.0
  %754 = vmatprep.subr.mxu0 0.0
  %755 = vmatpush1.msra.mxu0 0.0
  %756 = vmatprep.subr.mxu0 0.0
  %757 = vmatpush1.msra.mxu0 0.0
  %758 = vmatprep.subr.mxu0 0.0
  %759 = vmatpush1.msra.mxu0 0.0
  %760 = vmatprep.subr.mxu0 0.0
  %761 = vmatpush1.msra.mxu0 0.0
  %762 = vmatprep.subr.mxu0 0.0
  %763 = vmatpush1.msra.mxu0 0.0
  %764 = vmatprep.subr.mxu0 0.0
  %765 = vmatpush1.msra.mxu0 0.0
  %766 = vmatprep.subr.mxu0 0.0
  %767 = vmatpush1.msra.mxu0 0.0
  %768 = vmatprep.subr.mxu0 0.0
  %769 = vmatpush1.msra.mxu0 0.0
  %770 = vmatprep.subr.mxu0 0.0
  %771 = vmatpush1.msra.mxu0 0.0
  %772 = vmatprep.subr.mxu0 0.0
  %773 = vmatpush1.msra.mxu0 0.0
  %774 = vmatprep.subr.mxu0 0.0
  %775 = vmatpush1.msra.mxu0 0.0
  %776 = vmatprep.subr.mxu0 0.0
  %777 = vmatpush1.msra.mxu0 0.0
  %778 = vmatprep.subr.mxu0 0.0
  %779 = vmatpush1.msra.mxu0 0.0
  %780 = vmatprep.subr.mxu0 0.0
  %781 = vmatpush1.msra.mxu0 0.0
  %782 = vmatprep.subr.mxu0 0.0
  %783 = vmatpush1.msra.mxu0 0.0
  %784 = vmatprep.subr.mxu0 0.0
  %785 = vmatpush1.msra.mxu0 0.0
  %786 = vmatprep.subr.mxu0 0.0
  %787 = vmatpush1.msra.mxu0 0.0
  %788 = vmatprep.subr.mxu0 0.0
  %789 = vmatpush1.msra.mxu0 0.0
  %790 = vmatprep.mubr.f32.mxu0 0.0
  %791 = vmatmul.mubr.f32.gmra.mrb[0].mxu0 %v715
  %v792 = vpop.f32.mrb[0].mxu0
  %v793 = vadd.f32 %v713, %v792
  %v794 = vpop.f32.mrb[0].mxu0
  %795 = vmatprep.mubr.f32.mxu0 0.0
  %796 = vmatmul.mubr.f32.gmra.mrb[0].mxu0 %v718
  %v797 = vpop.f32.mrb[0].mxu0
  %v798 = vadd.f32 %v713, %v797
  %v799 = vpop.f32.mrb[0].mxu0
  %800 = vmatprep.mubr.f32.mxu0 0.0
  %801 = vmatmul.mubr.f32.gmra.mrb[0].mxu0 %v721
  %v802 = vpop.f32.mrb[0].mxu0
  %v803 = vadd.f32 %v713, %v802
  %v804 = vpop.f32.mrb[0].mxu0
  %805 = vmatprep.mubr.f32.mxu0 0.0
  %806 = vmatmul.mubr.f32.gmra.mrb[0].mxu0 %v724
  %v807 = vpop.f32.mrb[0].mxu0
  %v808 = vadd.f32 %v713, %v807
  %v809 = vpop.f32.mrb[0].mxu0
  %810 = vdwg.mxu0
  %v811 = vld [vmem:[%s9] sm:$0xf]
  %v812 = vld [vmem:[%s10] sm:$0xff]
  %v813 = vld [vmem:[%s10 + $0x8] sm:$0xff]
  %v814 = vld [vmem:[%s10 + $0x10] sm:$0xff]
  %v815 = vld [vmem:[%s10 + $0x18] sm:$0xff]
  %v816 = vld [vmem:[%s10 + $0x20] sm:$0x1]
  %v817 = vrot.slane %v793, 7
  %v818 = vrot.slane %v798, 7
  %v819 = vrot.slane %v803, 7
  %v820 = vrot.slane %v808, 7
  %v821 = vsel %vm117, %v819, %v820
  %v822 = vsel %vm117, %v818, %v819
  %v823 = vsel %vm117, %v817, %v818
  %v824 = vsel %vm117, %v820, %v817
  %v825 = vsel %vm126, %v824, 0.0
  %v826 = vsel %vm127, %v823, 0.0
  %v827 = vsel %vm128, %v822, 0.0
  %v828 = vsel %vm129, %v821, 0.0
  %v829 = vrot.slane %v793, 1
  %v830 = vrot.slane %v798, 1
  %v831 = vrot.slane %v803, 1
  %v832 = vrot.slane %v808, 1
  %v833 = vsel %vm138, %v831, %v832
  %v834 = vsel %vm138, %v830, %v831
  %v835 = vsel %vm138, %v829, %v830
  %v836 = vsel %vm138, %v832, %v829
  %v837 = vsel %vm147, %v835, 0.0
  %v838 = vsel %vm148, %v834, 0.0
  %v839 = vsel %vm149, %v833, 0.0
  %v840 = vsel %vm150, %v836, 0.0
  %v841 = vlaneseq
  %v842 = vshrl.u32 %v841, 7
  %v843 = vsub.s32 0, %v842
  %v844 = vrot.slane %v811, %v843
  %v845 = vmul.f32 %v825, %v844
  %v846 = vmul.f32 %v826, %v844
  %v847 = vmul.f32 %v827, %v844
  %v848 = vmul.f32 %v828, %v844
  %v849 = vlaneseq
  %v850 = vshrl.u32 %v849, 7
  %v851 = vsub.s32 1, %v850
  %v852 = vrot.slane %v811, %v851
  %v853 = vmul.f32 %v793, %v852
  %v854 = vmul.f32 %v798, %v852
  %v855 = vmul.f32 %v803, %v852
  %v856 = vmul.f32 %v808, %v852
  %v857 = vadd.f32 %v845, %v853
  %v858 = vadd.f32 %v846, %v854
  %v859 = vadd.f32 %v847, %v855
  %v860 = vadd.f32 %v848, %v856
  %v861 = vlaneseq
  %v862 = vshrl.u32 %v861, 7
  %v863 = vsub.s32 2, %v862
  %v864 = vrot.slane %v811, %v863
  %v865 = vmul.f32 %v837, %v864
  %v866 = vmul.f32 %v838, %v864
  %v867 = vmul.f32 %v839, %v864
  %v868 = vmul.f32 %v840, %v864
  %v869 = vadd.f32 %v857, %v865
  %v870 = vadd.f32 %v858, %v866
  %v871 = vadd.f32 %v859, %v867
  %v872 = vadd.f32 %v860, %v868
  %v873 = vlaneseq
  %v874 = vshrl.u32 %v873, 7
  %v875 = vsub.s32 3, %v874
  %v876 = vrot.slane %v811, %v875
  %v877 = vadd.f32 %v869, %v876
  %v878 = vadd.f32 %v870, %v876
  %v879 = vadd.f32 %v871, %v876
  %v880 = vadd.f32 %v872, %v876
  %v881 = vlaneseq
  %v882 = vshrl.u32 %v881, 7
  %v883 = vsub.s32 0, %v882
  %v884 = vrot.slane %v816, %v883
  %v886 = vsel %vm371, %v877, 0
  %v889 = vsel %vm371, %v878, 0
  %v892 = vsel %vm371, %v879, 0
  %v895 = vsel %vm371, %v880, 0
  %897 = vmatprep.subr.mxu0 0.0
  %898 = vmatpush1.msra.mxu0 %v812
  %899 = vmatprep.subr.mxu0 0.0
  %900 = vmatpush1.msra.mxu0 %v813
  %901 = vmatprep.subr.mxu0 0.0
  %902 = vmatpush1.msra.mxu0 %v814
  %903 = vmatprep.subr.mxu0 0.0
  %904 = vmatpush1.msra.mxu0 %v815
  %905 = vmatprep.subr.mxu0 0.0
  %906 = vmatpush1.msra.mxu0 0.0
  %907 = vmatprep.subr.mxu0 0.0
  %908 = vmatpush1.msra.mxu0 0.0
  %909 = vmatprep.subr.mxu0 0.0
  %910 = vmatpush1.msra.mxu0 0.0
  %911 = vmatprep.subr.mxu0 0.0
  %912 = vmatpush1.msra.mxu0 0.0
  %913 = vmatprep.subr.mxu0 0.0
  %914 = vmatpush1.msra.mxu0 0.0
  %915 = vmatprep.subr.mxu0 0.0
  %916 = vmatpush1.msra.mxu0 0.0
  %917 = vmatprep.subr.mxu0 0.0
  %918 = vmatpush1.msra.mxu0 0.0
  %919 = vmatprep.subr.mxu0 0.0
  %920 = vmatpush1.msra.mxu0 0.0
  %921 = vmatprep.subr.mxu0 0.0
  %922 = vmatpush1.msra.mxu0 0.0
  %923 = vmatprep.subr.mxu0 0.0
  %924 = vmatpush1.msra.mxu0 0.0
  %925 = vmatprep.subr.mxu0 0.0
  %926 = vmatpush1.msra.mxu0 0.0
  %927 = vmatprep.subr.mxu0 0.0
  %928 = vmatpush1.msra.mxu0 0.0
  %929 = vmatprep.subr.mxu0 0.0
  %930 = vmatpush1.msra.mxu0 0.0
  %931 = vmatprep.subr.mxu0 0.0
  %932 = vmatpush1.msra.mxu0 0.0
  %933 = vmatprep.subr.mxu0 0.0
  %934 = vmatpush1.msra.mxu0 0.0
  %935 = vmatprep.subr.mxu0 0.0
  %936 = vmatpush1.msra.mxu0 0.0
  %937 = vmatprep.subr.mxu0 0.0
  %938 = vmatpush1.msra.mxu0 0.0
  %939 = vmatprep.subr.mxu0 0.0
  %940 = vmatpush1.msra.mxu0 0.0
  %941 = vmatprep.subr.mxu0 0.0
  %942 = vmatpush1.msra.mxu0 0.0
  %943 = vmatprep.subr.mxu0 0.0
  %944 = vmatpush1.msra.mxu0 0.0
  %945 = vmatprep.subr.mxu0 0.0
  %946 = vmatpush1.msra.mxu0 0.0
  %947 = vmatprep.subr.mxu0 0.0
  %948 = vmatpush1.msra.mxu0 0.0
  %949 = vmatprep.subr.mxu0 0.0
  %950 = vmatpush1.msra.mxu0 0.0
  %951 = vmatprep.subr.mxu0 0.0
  %952 = vmatpush1.msra.mxu0 0.0
  %953 = vmatprep.subr.mxu0 0.0
  %954 = vmatpush1.msra.mxu0 0.0
  %955 = vmatprep.subr.mxu0 0.0
  %956 = vmatpush1.msra.mxu0 0.0
  %957 = vmatprep.subr.mxu0 0.0
  %958 = vmatpush1.msra.mxu0 0.0
  %959 = vmatprep.subr.mxu0 0.0
  %960 = vmatpush1.msra.mxu0 0.0
  %961 = vmatprep.mubr.f32.mxu0 0.0
  %962 = vmatmul.mubr.f32.gmra.mrb[0].mxu0 %v886
  %v963 = vpop.f32.mrb[0].mxu0
  %v964 = vadd.f32 %v884, %v963
  %v965 = vpop.f32.mrb[0].mxu0
  %966 = vmatprep.mubr.f32.mxu0 0.0
  %967 = vmatmul.mubr.f32.gmra.mrb[0].mxu0 %v889
  %v968 = vpop.f32.mrb[0].mxu0
  %v969 = vadd.f32 %v884, %v968
  %v970 = vpop.f32.mrb[0].mxu0
  %971 = vmatprep.mubr.f32.mxu0 0.0
  %972 = vmatmul.mubr.f32.gmra.mrb[0].mxu0 %v892
  %v973 = vpop.f32.mrb[0].mxu0
  %v974 = vadd.f32 %v884, %v973
  %v975 = vpop.f32.mrb[0].mxu0
  %976 = vmatprep.mubr.f32.mxu0 0.0
  %977 = vmatmul.mubr.f32.gmra.mrb[0].mxu0 %v895
  %v978 = vpop.f32.mrb[0].mxu0
  %v979 = vadd.f32 %v884, %v978
  %v980 = vpop.f32.mrb[0].mxu0
  %981 = vdwg.mxu0
  %v982 = vld [vmem:[%s11] sm:$0xff]
  %v983 = vld [vmem:[%s11 + $0x8] sm:$0xff]
  %v984 = vld [vmem:[%s11 + $0x10] sm:$0xff]
  %v985 = vld [vmem:[%s11 + $0x18] sm:$0xff]
  %v986 = vld [vmem:[%s11 + $0x20] sm:$0x1]
  %v987 = vld [vmem:[%s12] sm:$0xff]
  %v988 = vld [vmem:[%s12 + $0x8] sm:$0xff]
  %v989 = vld [vmem:[%s12 + $0x10] sm:$0xff]
  %v990 = vld [vmem:[%s12 + $0x18] sm:$0xff]
  %v991 = vld [vmem:[%s12 + $0x20] sm:$0xff]
  %v992 = vld [vmem:[%s12 + $0x28] sm:$0xff]
  %v993 = vld [vmem:[%s12 + $0x30] sm:$0xff]
  %v994 = vld [vmem:[%s12 + $0x38] sm:$0xff]
  %v995 = vld [vmem:[%s12 + $0x40] sm:$0x1]
  %v996 = vlaneseq
  %v997 = vshrl.u32 %v996, 7
  %v998 = vsub.s32 0, %v997
  %v999 = vrot.slane %v986, %v998
  %v1001 = vsel %vm371, %v964, 0
  %v1004 = vsel %vm371, %v969, 0
  %v1007 = vsel %vm371, %v974, 0
  %v1010 = vsel %vm371, %v979, 0
  %1012 = vmatprep.subr.mxu0 0.0
  %1013 = vmatpush1.msra.mxu0 %v982
  %1014 = vmatprep.subr.mxu0 0.0
  %1015 = vmatpush1.msra.mxu0 %v983
  %1016 = vmatprep.subr.mxu0 0.0
  %1017 = vmatpush1.msra.mxu0 %v984
  %1018 = vmatprep.subr.mxu0 0.0
  %1019 = vmatpush1.msra.mxu0 %v985
  %1020 = vmatprep.subr.mxu0 0.0
  %1021 = vmatpush1.msra.mxu0 0.0
  %1022 = vmatprep.subr.mxu0 0.0
  %1023 = vmatpush1.msra.mxu0 0.0
  %1024 = vmatprep.subr.mxu0 0.0
  %1025 = vmatpush1.msra.mxu0 0.0
  %1026 = vmatprep.subr.mxu0 0.0
  %1027 = vmatpush1.msra.mxu0 0.0
  %1028 = vmatprep.subr.mxu0 0.0
  %1029 = vmatpush1.msra.mxu0 0.0
  %1030 = vmatprep.subr.mxu0 0.0
  %1031 = vmatpush1.msra.mxu0 0.0
  %1032 = vmatprep.subr.mxu0 0.0
  %1033 = vmatpush1.msra.mxu0 0.0
  %1034 = vmatprep.subr.mxu0 0.0
  %1035 = vmatpush1.msra.mxu0 0.0
  %1036 = vmatprep.subr.mxu0 0.0
  %1037 = vmatpush1.msra.mxu0 0.0
  %1038 = vmatprep.subr.mxu0 0.0
  %1039 = vmatpush1.msra.mxu0 0.0
  %1040 = vmatprep.subr.mxu0 0.0
  %1041 = vmatpush1.msra.mxu0 0.0
  %1042 = vmatprep.subr.mxu0 0.0
  %1043 = vmatpush1.msra.mxu0 0.0
  %1044 = vmatprep.subr.mxu0 0.0
  %1045 = vmatpush1.msra.mxu0 0.0
  %1046 = vmatprep.subr.mxu0 0.0
  %1047 = vmatpush1.msra.mxu0 0.0
  %1048 = vmatprep.subr.mxu0 0.0
  %1049 = vmatpush1.msra.mxu0 0.0
  %1050 = vmatprep.subr.mxu0 0.0
  %1051 = vmatpush1.msra.mxu0 0.0
  %1052 = vmatprep.subr.mxu0 0.0
  %1053 = vmatpush1.msra.mxu0 0.0
  %1054 = vmatprep.subr.mxu0 0.0
  %1055 = vmatpush1.msra.mxu0 0.0
  %1056 = vmatprep.subr.mxu0 0.0
  %1057 = vmatpush1.msra.mxu0 0.0
  %1058 = vmatprep.subr.mxu0 0.0
  %1059 = vmatpush1.msra.mxu0 0.0
  %1060 = vmatprep.subr.mxu0 0.0
  %1061 = vmatpush1.msra.mxu0 0.0
  %1062 = vmatprep.subr.mxu0 0.0
  %1063 = vmatpush1.msra.mxu0 0.0
  %1064 = vmatprep.subr.mxu0 0.0
  %1065 = vmatpush1.msra.mxu0 0.0
  %1066 = vmatprep.subr.mxu0 0.0
  %1067 = vmatpush1.msra.mxu0 0.0
  %1068 = vmatprep.subr.mxu0 0.0
  %1069 = vmatpush1.msra.mxu0 0.0
  %1070 = vmatprep.subr.mxu0 0.0
  %1071 = vmatpush1.msra.mxu0 0.0
  %1072 = vmatprep.subr.mxu0 0.0
  %1073 = vmatpush1.msra.mxu0 0.0
  %1074 = vmatprep.subr.mxu0 0.0
  %1075 = vmatpush1.msra.mxu0 0.0
  %1076 = vmatprep.mubr.f32.mxu0 0.0
  %1077 = vmatmul.mubr.f32.gmra.mrb[0].mxu0 %v1001
  %v1078 = vpop.f32.mrb[0].mxu0
  %v1079 = vadd.f32 %v999, %v1078
  %v1080 = vpop.f32.mrb[0].mxu0
  %1081 = vmatprep.mubr.f32.mxu0 0.0
  %1082 = vmatmul.mubr.f32.gmra.mrb[0].mxu0 %v1004
  %v1083 = vpop.f32.mrb[0].mxu0
  %v1084 = vadd.f32 %v999, %v1083
  %v1085 = vpop.f32.mrb[0].mxu0
  %1086 = vmatprep.mubr.f32.mxu0 0.0
  %1087 = vmatmul.mubr.f32.gmra.mrb[0].mxu0 %v1007
  %v1088 = vpop.f32.mrb[0].mxu0
  %v1089 = vadd.f32 %v999, %v1088
  %v1090 = vpop.f32.mrb[0].mxu0
  %1091 = vmatprep.mubr.f32.mxu0 0.0
  %1092 = vmatmul.mubr.f32.gmra.mrb[0].mxu0 %v1010
  %v1093 = vpop.f32.mrb[0].mxu0
  %v1094 = vadd.f32 %v999, %v1093
  %v1095 = vpop.f32.mrb[0].mxu0
  %1096 = vdwg.mxu0
  %v1097 = vmax.f32 %v1079, 0.0
  %v1098 = vmax.f32 %v1084, 0.0
  %v1099 = vmax.f32 %v1089, 0.0
  %v1100 = vmax.f32 %v1094, 0.0
  %v1101 = vlaneseq
  %v1102 = vshrl.u32 %v1101, 7
  %v1103 = vsub.s32 0, %v1102
  %v1104 = vrot.slane %v995, %v1103
  %vm1105 = vcmask 523264
  %v1107 = vsel %vm1105, %v1097, 0
  %v1110 = vsel %vm1105, %v1098, 0
  %v1113 = vsel %vm1105, %v1099, 0
  %v1116 = vsel %vm1105, %v1100, 0
  %1118 = vmatprep.subr.mxu0 0.0
  %1119 = vmatpush1.msra.mxu0 %v987
  %1120 = vmatprep.subr.mxu0 0.0
  %1121 = vmatpush1.msra.mxu0 %v988
  %1122 = vmatprep.subr.mxu0 0.0
  %1123 = vmatpush1.msra.mxu0 %v989
  %1124 = vmatprep.subr.mxu0 0.0
  %1125 = vmatpush1.msra.mxu0 %v990
  %1126 = vmatprep.subr.mxu0 0.0
  %1127 = vmatpush1.msra.mxu0 %v991
  %1128 = vmatprep.subr.mxu0 0.0
  %1129 = vmatpush1.msra.mxu0 %v992
  %1130 = vmatprep.subr.mxu0 0.0
  %1131 = vmatpush1.msra.mxu0 %v993
  %1132 = vmatprep.subr.mxu0 0.0
  %1133 = vmatpush1.msra.mxu0 %v994
  %1134 = vmatprep.subr.mxu0 0.0
  %1135 = vmatpush1.msra.mxu0 0.0
  %1136 = vmatprep.subr.mxu0 0.0
  %1137 = vmatpush1.msra.mxu0 0.0
  %1138 = vmatprep.subr.mxu0 0.0
  %1139 = vmatpush1.msra.mxu0 0.0
  %1140 = vmatprep.subr.mxu0 0.0
  %1141 = vmatpush1.msra.mxu0 0.0
  %1142 = vmatprep.subr.mxu0 0.0
  %1143 = vmatpush1.msra.mxu0 0.0
  %1144 = vmatprep.subr.mxu0 0.0
  %1145 = vmatpush1.msra.mxu0 0.0
  %1146 = vmatprep.subr.mxu0 0.0
  %1147 = vmatpush1.msra.mxu0 0.0
  %1148 = vmatprep.subr.mxu0 0.0
  %1149 = vmatpush1.msra.mxu0 0.0
  %1150 = vmatprep.subr.mxu0 0.0
  %1151 = vmatpush1.msra.mxu0 0.0
  %1152 = vmatprep.subr.mxu0 0.0
  %1153 = vmatpush1.msra.mxu0 0.0
  %1154 = vmatprep.subr.mxu0 0.0
  %1155 = vmatpush1.msra.mxu0 0.0
  %1156 = vmatprep.subr.mxu0 0.0
  %1157 = vmatpush1.msra.mxu0 0.0
  %1158 = vmatprep.subr.mxu0 0.0
  %1159 = vmatpush1.msra.mxu0 0.0
  %1160 = vmatprep.subr.mxu0 0.0
  %1161 = vmatpush1.msra.mxu0 0.0
  %1162 = vmatprep.subr.mxu0 0.0
  %1163 = vmatpush1.msra.mxu0 0.0
  %1164 = vmatprep.subr.mxu0 0.0
  %1165 = vmatpush1.msra.mxu0 0.0
  %1166 = vmatprep.subr.mxu0 0.0
  %1167 = vmatpush1.msra.mxu0 0.0
  %1168 = vmatprep.subr.mxu0 0.0
  %1169 = vmatpush1.msra.mxu0 0.0
  %1170 = vmatprep.subr.mxu0 0.0
  %1171 = vmatpush1.msra.mxu0 0.0
  %1172 = vmatprep.subr.mxu0 0.0
  %1173 = vmatpush1.msra.mxu0 0.0
  %1174 = vmatprep.subr.mxu0 0.0
  %1175 = vmatpush1.msra.mxu0 0.0
  %1176 = vmatprep.subr.mxu0 0.0
  %1177 = vmatpush1.msra.mxu0 0.0
  %1178 = vmatprep.subr.mxu0 0.0
  %1179 = vmatpush1.msra.mxu0 0.0
  %1180 = vmatprep.subr.mxu0 0.0
  %1181 = vmatpush1.msra.mxu0 0.0
  %1182 = vmatprep.mubr.f32.mxu0 0.0
  %1183 = vmatmul.mubr.f32.gmra.mrb[0].mxu0 %v1107
  %v1184 = vpop.f32.mrb[0].mxu0
  %v1185 = vadd.f32 %v1104, %v1184
  %v1186 = vpop.f32.mrb[0].mxu0
  %1187 = vmatprep.mubr.f32.mxu0 0.0
  %1188 = vmatmul.mubr.f32.gmra.mrb[0].mxu0 %v1110
  %v1189 = vpop.f32.mrb[0].mxu0
  %v1190 = vadd.f32 %v1104, %v1189
  %v1191 = vpop.f32.mrb[0].mxu0
  %1192 = vmatprep.mubr.f32.mxu0 0.0
  %1193 = vmatmul.mubr.f32.gmra.mrb[0].mxu0 %v1113
  %v1194 = vpop.f32.mrb[0].mxu0
  %v1195 = vadd.f32 %v1104, %v1194
  %v1196 = vpop.f32.mrb[0].mxu0
  %1197 = vmatprep.mubr.f32.mxu0 0.0
  %1198 = vmatmul.mubr.f32.gmra.mrb[0].mxu0 %v1116
  %v1199 = vpop.f32.mrb[0].mxu0
  %v1200 = vadd.f32 %v1104, %v1199
  %v1201 = vpop.f32.mrb[0].mxu0
  %1202 = vdwg.mxu0
  %1203 = vst [vmem:[%s13] sm:$0xff] %v1185
  %1204 = vst [vmem:[%s13 + $0x8] sm:$0xff] %v1190
  %1205 = vst [vmem:[%s13 + $0x10] sm:$0xff] %v1195
  %1206 = vst [vmem:[%s13 + $0x18] sm:$0xff] %v1200
  // Predicated region
  $region54: #{acoustic_encoder_forward.1} parent=0 // pred_check
    _
  $region55: #{acoustic_encoder_forward.1} parent=0 // pred_check_branch
    %1208 = sbr.rel (0) target = $region57
  $region56: #{acoustic_encoder_forward.1} parent=0 // pred_region
    _
  $region57: #{acoustic_encoder_forward.1} parent=0 // pred_fallthru
    _
  // Predicated region
  $region58: #{acoustic_encoder_forward.1} parent=0 // pred_check
    _
  $region59: #{acoustic_encoder_forward.1} parent=0 // pred_check_branch
    %1210 = sbr.rel (0) target = $region61
  $region60: #{acoustic_encoder_forward.1} parent=0 // pred_region
    _
  $region61: #{acoustic_encoder_forward.1} parent=0 // pred_fallthru
    _

</llo_original>
